<compile_context>
chip_gen: v7x
topology: tpu7x:2x2x1
jax: 0.10.0
libtpu: 0.0.40
codegen_flags: <defaults>
</compile_context>

<pallas_src>
import functools

import jax
import jax.numpy as jnp
from jax.experimental import pallas as pl
from jax.experimental.pallas import tpu as pltpu


def _round_up(x: int, m: int) -> int:
    return (x + m - 1) // m * m


def _gnn_block_kernel(
    nf_src_ref,     # (1, Np, Hp)  node features at timestep t (f32), source copy
    nf_dst_ref,     # (1, TD, Hp)  node features of this dst tile (f32)
    adj_ref,        # (TD, Np)     adjacency tile, adj[v, u] = 1 iff edge u -> v
    w_att_dst_ref,  # (1, Hp)      attn_model weight, destination half (f32)
    w_att_src_ref,  # (1, Hp)      attn_model weight, source half (f32)
    b_att_ref,      # (1, 1)       attn_model bias (f32)
    w_msg_src_ref,  # (Hp, Hp)     node_model weight, source half (bf16)
    w_msg_dst_ref,  # (Hp, Hp)     node_model weight, destination half (bf16)
    b_msg_ref,      # (1, Hp)      node_model bias (f32)
    w_upd_h_ref,    # (Hp, Hp)     update weight, h half (bf16)
    w_upd_agg_ref,  # (Hp, Hp)     update weight, aggregated-message half (bf16)
    b_upd_ref,      # (1, Hp)      update bias (f32)
    out_ref,        # (1, TD, Hp)  updated node features of this dst tile (f32)
    attn_ref,       # (1, TD, Np)  attention alpha[v, u]  (dst, src), bf16
    m_src_scr,      # (Np, Hp)     VMEM scratch: per-timestep source messages (bf16)
    *,
    negative_slope: float,
):
    f32 = jnp.float32
    bf16 = jnp.bfloat16

    h_src = nf_src_ref[0]              # [Np, Hp] f32 (full node set, source side)
    h_dst = nf_dst_ref[0]              # [TD, Hp] f32 (this dst tile)
    adj = adj_ref[...]                 # [TD, Np] f32  (dst rows, src cols)

    # ---- per-timestep work: source messages, cached across dst tiles -------------
    @pl.when(pl.program_id(1) == 0)
    def _():
        m_src_scr[...] = jnp.dot(h_src.astype(bf16), w_msg_src_ref[...],
                                 preferred_element_type=f32).astype(bf16)

    # ---- attention logits: logit[v, u] = leaky_relu(e_dst[v] + e_src[u] + b) ----
    # Tiny matmuls; kept in f32 so softmax math stays f32 (v5e-friendly).
    e_dst = jnp.sum(h_dst * w_att_dst_ref[...], axis=1, keepdims=True)        # [TD,1]
    e_src = jax.lax.dot_general(                                              # [1,Np]
        w_att_src_ref[...], h_src, (((1,), (1,)), ((), ())),
        preferred_element_type=f32)
    z = e_dst + e_src + b_att_ref[...]                                        # [TD,Np]
    # leaky_relu(z) == max(z, slope*z) for 0 < slope < 1.
    logits = jnp.maximum(z, f32(negative_slope) * z)

    # ---- masked softmax over incoming edges (lane axis = sources) ----------------
    neg_big = f32(-1e30)                        # finite, avoids inf - inf NaNs
    masked = jnp.where(adj > 0, logits, neg_big)
    row_max = jnp.max(masked, axis=1, keepdims=True)                          # [TD,1]
    p = jnp.exp(masked - row_max) * adj         # reuse mask tile to re-zero non-edges
    row_sum = jnp.sum(p, axis=1, keepdims=True)                               # [TD,1]
    # approx reciprocal (EUP slot): rows sum to 1 only to ~1e-3/1e-4; fine here.
    inv = pl.reciprocal(row_sum + f32(1e-9), approx=True)
    alpha = p * inv                             # rows sum to 1 (or 0 if no in-edges)
    alpha_bf = alpha.astype(bf16)               # cast once: stored AND fed to MXU
    attn_ref[0] = alpha_bf

    # ---- messages via src/dst decomposition (never materialize [N,N,H]) ----------
    hb_dst = h_dst.astype(bf16)
    m_dst = jnp.dot(hb_dst, w_msg_dst_ref[...],
                    preferred_element_type=f32) + b_msg_ref[...]              # [TD,Hp]

    # agg[v] = sum_u alpha[v, u] * (m_src[u] + m_dst[v] + b_msg)
    wsum = row_sum * inv                     # == sum(alpha): 1 if in-edges, else 0
    agg = jnp.dot(alpha_bf, m_src_scr[...],
                  preferred_element_type=f32) + wsum * m_dst                  # [TD,Hp]

    # ---- node update: relu([h || agg] @ W_upd + b), concat decomposed ------------
    upd = (jnp.dot(hb_dst, w_upd_h_ref[...], preferred_element_type=f32)
           + jnp.dot(agg.astype(bf16), w_upd_agg_ref[...],
                     preferred_element_type=f32)
           + b_upd_ref[...])
    out_ref[0] = jnp.maximum(upd, f32(0.0)).astype(out_ref.dtype)


def gnn_block_check_forward(nf, adj, w_att, b_att, w_msg, b_msg, w_upd, b_upd,
                            negative_slope=0.2):
    """Forward pass of GraphNeuralNetworkBlockCheck.

    nf   : [N, T, H]  node features over time (nodes, time, hidden)
    adj  : [N, N]     dense adjacency, adj[u, v] = 1. iff edge u -> v
    w_att: [2H, 1], b_att: scalar     attn_model  (Linear(2H, 1))
    w_msg: [2H, H], b_msg: [H]        node_model  (Linear(2H, H))
    w_upd: [2H, H], b_upd: [H]        node update (Linear(2H, H))

    Returns:
      updated_nf: [N, T, H]
      attn      : [T, N, N]  with attn[t, u, v] = alpha_t(u -> v)
    """
    f32 = jnp.float32
    bf16 = jnp.bfloat16
    N, T, H = nf.shape
    Hp = _round_up(H, 128)   # lane-aligned hidden size
    Np = _round_up(N, 128)   # lane-aligned node count (source axis)
    Nr = _round_up(N, 16)    # minimally padded dst axis (16 = bf16 sublane pack)

    # dst-tile size: one tile for small graphs (keeps the 16-row padding win);
    # for large graphs tile the 128-aligned dst axis so the per-step adjacency /
    # attention working set fits VMEM (v7x: 64 MiB per TC).
    if Nr <= 512:
        td, d_total = Nr, Nr
    else:
        td = max(t for t in (512, 256, 128) if Np % t == 0)
        d_total = Np
    n_dst = d_total // td

    # Time-major node features so T can be the (parallel) grid axis.
    nf_tm = jnp.pad(jnp.transpose(nf.astype(f32), (1, 0, 2)),
                    ((0, 0), (0, Np - N), (0, Hp - H)))           # [T, Np, Hp]
    nf_dst = nf_tm[:, :d_total, :]                                # [T, d_total, Hp]

    # Adjacency in (dst, src) layout: softmax reduces over the lane axis and the
    # aggregation matmul alpha @ m_src needs no transpose.
    adj_ds = jnp.pad(jnp.transpose(adj.astype(f32)),
                     ((0, d_total - N), (0, Np - N)))             # [d_total, Np]

    def pad2(w, rows, cols, dtype=f32):
        w = w.astype(f32)
        w = jnp.pad(w, ((0, rows - w.shape[0]), (0, cols - w.shape[1])))
        return w.astype(dtype)

    w_att_src_row = pad2(jnp.transpose(w_att[:H, :]), 1, Hp)      # [1, Hp] f32
    w_att_dst_row = pad2(jnp.transpose(w_att[H:, :]), 1, Hp)      # [1, Hp] f32
    b_att_arr = jnp.full((1, 1), b_att, f32)

    # MXU-only weights live as bf16 residents: no per-step casts, half the VMEM.
    w_msg_src = pad2(w_msg[:H, :], Hp, Hp, bf16)
    w_msg_dst = pad2(w_msg[H:, :], Hp, Hp, bf16)
    b_msg_row = pad2(b_msg.reshape(1, H), 1, Hp)
    w_upd_h = pad2(w_upd[:H, :], Hp, Hp, bf16)
    w_upd_agg = pad2(w_upd[H:, :], Hp, Hp, bf16)
    b_upd_row = pad2(b_upd.reshape(1, H), 1, Hp)

    # Constant block index -> block stays VMEM-resident across the whole grid.
    const = lambda shape: pl.BlockSpec(shape, lambda t, d: (0,) * len(shape))

    grid_spec = pltpu.PrefetchScalarGridSpec(
        num_scalar_prefetch=0,
        grid=(T, n_dst),
        in_specs=[
            pl.BlockSpec((1, Np, Hp), lambda t, d: (t, 0, 0)),  # src feats (per t)
            pl.BlockSpec((1, td, Hp), lambda t, d: (t, d, 0)),  # dst feats (per tile)
            pl.BlockSpec((td, Np), lambda t, d: (d, 0)),        # adjacency tile
            const((1, Hp)),       # w_att_dst
            const((1, Hp)),       # w_att_src
            const((1, 1)),        # b_att
            const((Hp, Hp)),      # w_msg_src (bf16)
            const((Hp, Hp)),      # w_msg_dst (bf16)
            const((1, Hp)),       # b_msg
            const((Hp, Hp)),      # w_upd_h (bf16)
            const((Hp, Hp)),      # w_upd_agg (bf16)
            const((1, Hp)),       # b_upd
        ],
        out_specs=[
            pl.BlockSpec((1, td, Hp), lambda t, d: (t, d, 0)),  # updated nf tile
            pl.BlockSpec((1, td, Np), lambda t, d: (t, d, 0)),  # attention tile (bf16)
        ],
        scratch_shapes=[pltpu.VMEM((Np, Hp), bf16)],            # per-t source messages
    )

    out_pad, attn_pad = pl.pallas_call(
        functools.partial(_gnn_block_kernel, negative_slope=negative_slope),
        out_shape=(jax.ShapeDtypeStruct((T, d_total, Hp), f32),
                   jax.ShapeDtypeStruct((T, d_total, Np), bf16)),
        grid_spec=grid_spec,
        compiler_params=pltpu.CompilerParams(
            # t is parallel (megacore); dst axis is "arbitrary" because m_src is
            # carried in scratch across dst tiles of the same timestep.
            dimension_semantics=("parallel", "arbitrary"),
            vmem_limit_bytes=64 * 1024 * 1024),
    )(nf_tm, nf_dst, adj_ds, w_att_dst_row, w_att_src_row, b_att_arr,
      w_msg_src, w_msg_dst, b_msg_row, w_upd_h, w_upd_agg, b_upd_row)

    updated_nf = jnp.transpose(out_pad[:, :N, :H], (1, 0, 2))     # [N, T, H]
    # TODO(synk): consumers that accept (dst, src) attention layout can skip this
    #             transpose (it is a full extra HBM pass over the largest tensor).
    attn = jnp.transpose(attn_pad[:, :N, :N].astype(f32), (0, 2, 1))  # [T, src, dst]
    return updated_nf, attn


def _reference_forward(nf, adj, w_att, b_att, w_msg, b_msg, w_upd, b_upd,
                       negative_slope=0.2):
    """Pure-JAX reference that materializes the [N, N, 2H] pair tensor."""
    N, T, H = nf.shape
    outs, attns = [], []
    for t in range(T):
        h = nf[:, t, :].astype(jnp.float32)
        hu = jnp.broadcast_to(h[:, None, :], (N, N, H))   # source u
        hv = jnp.broadcast_to(h[None, :, :], (N, N, H))   # destination v
        pair = jnp.concatenate([hu, hv], axis=-1)         # [N, N, 2H]
        logit = jnp.einsum("uvk,k->uv", pair, w_att[:, 0],
                           precision="highest") + b_att
        logit = jnp.where(logit >= 0, logit, negative_slope * logit)
        masked = jnp.where(adj > 0, logit, -1e30)
        mmax = masked.max(axis=0, keepdims=True)
        p = jnp.exp(masked - mmax) * adj
        denom = p.sum(axis=0, keepdims=True)
        alpha = jnp.where(denom > 0, p / jnp.where(denom > 0, denom, 1.0), 0.0)
        msg = jnp.einsum("uvk,kh->uvh", pair, w_msg, precision="highest") + b_msg
        agg = jnp.einsum("uv,uvh->vh", alpha, msg, precision="highest")
        out = jnp.einsum("vk,kh->vh", jnp.concatenate([h, agg], axis=-1), w_upd,
                         precision="highest") + b_upd
        outs.append(jnp.maximum(out, 0.0))
        attns.append(alpha)
    return jnp.stack(outs, axis=1), jnp.stack(attns, axis=0)


if __name__ == "__main__":
    key = jax.random.PRNGKey(0)
    N, T, H = 16, 8, 32
    ks = jax.random.split(key, 8)

    nf = jax.random.normal(ks[0], (N, T, H), jnp.float32)
    adj = (jax.random.uniform(ks[1], (N, N)) < 0.35).astype(jnp.float32)

    scale = 1.0 / float(jnp.sqrt(jnp.float32(2 * H)))
    w_att = jax.random.normal(ks[2], (2 * H, 1), jnp.float32) * scale
    b_att = 0.1
    w_msg = jax.random.normal(ks[3], (2 * H, H), jnp.float32) * scale
    b_msg = jax.random.normal(ks[4], (H,), jnp.float32) * 0.1
    w_upd = jax.random.normal(ks[5], (2 * H, H), jnp.float32) * scale
    b_upd = jax.random.normal(ks[6], (H,), jnp.float32) * 0.1

    fwd = jax.jit(gnn_block_check_forward)
    updated_nf, attn = fwd(nf, adj, w_att, b_att, w_msg, b_msg, w_upd, b_upd)
    updated_nf, attn = jax.block_until_ready((updated_nf, attn))

    assert updated_nf.shape == (N, T, H), updated_nf.shape
    assert attn.shape == (T, N, N), attn.shape

    ref_nf, ref_attn = _reference_forward(nf, adj, w_att, b_att,
                                          w_msg, b_msg, w_upd, b_upd)
    nf_err = float(jnp.max(jnp.abs(updated_nf - ref_nf)))
    attn_err = float(jnp.max(jnp.abs(attn - ref_attn)))
    assert nf_err < 0.1, f"updated_nf mismatch: max abs err {nf_err}"
    assert attn_err < 0.02, f"attention mismatch: max abs err {attn_err}"

    print("KERNEL_OK")
</pallas_src>

<mosaic_0001>
module attributes {stable_mosaic.version = 11 : i64} {
  func.func @_gnn_block_kernel(%arg0: i32, %arg1: i32, %arg2: memref<1x128x128xf32, #tpu.memory_space<vmem>>, %arg3: memref<1x16x128xf32, #tpu.memory_space<vmem>>, %arg4: memref<16x128xf32, #tpu.memory_space<vmem>>, %arg5: memref<1x128xf32, #tpu.memory_space<vmem>>, %arg6: memref<1x128xf32, #tpu.memory_space<vmem>>, %arg7: memref<1x1xf32, #tpu.memory_space<vmem>>, %arg8: memref<128x128xbf16, #tpu.memory_space<vmem>>, %arg9: memref<128x128xbf16, #tpu.memory_space<vmem>>, %arg10: memref<1x128xf32, #tpu.memory_space<vmem>>, %arg11: memref<128x128xbf16, #tpu.memory_space<vmem>>, %arg12: memref<128x128xbf16, #tpu.memory_space<vmem>>, %arg13: memref<1x128xf32, #tpu.memory_space<vmem>>, %arg14: memref<1x16x128xf32, #tpu.memory_space<vmem>>, %arg15: memref<1x16x128xbf16, #tpu.memory_space<vmem>>, %arg16: memref<128x128xbf16, #tpu.memory_space<vmem>>) attributes {dimension_semantics = [#tpu.dimension_semantics<parallel>, #tpu.dimension_semantics<arbitrary>], iteration_bounds = array<i64: 8, 1>, scalar_prefetch = 0 : i64, scratch_operands = 1 : i64, tpu.core_type = #tpu.core_type<tc>, window_params = [{transform_indices = @transform_0, window_bounds = array<i64: 1, 128, 128>}, {transform_indices = @transform_1, window_bounds = array<i64: 1, 16, 128>}, {transform_indices = @transform_2, window_bounds = array<i64: 16, 128>}, {pipeline_mode = #tpu.pipeline_mode<synchronous>, transform_indices = @transform_3, window_bounds = array<i64: 1, 128>}, {pipeline_mode = #tpu.pipeline_mode<synchronous>, transform_indices = @transform_4, window_bounds = array<i64: 1, 128>}, {pipeline_mode = #tpu.pipeline_mode<synchronous>, transform_indices = @transform_5, window_bounds = array<i64: 1, 1>}, {pipeline_mode = #tpu.pipeline_mode<synchronous>, transform_indices = @transform_6, window_bounds = array<i64: 128, 128>}, {pipeline_mode = #tpu.pipeline_mode<synchronous>, transform_indices = @transform_7, window_bounds = array<i64: 128, 128>}, {pipeline_mode = #tpu.pipeline_mode<synchronous>, transform_indices = @transform_8, window_bounds = array<i64: 1, 128>}, {pipeline_mode = #tpu.pipeline_mode<synchronous>, transform_indices = @transform_9, window_bounds = array<i64: 128, 128>}, {pipeline_mode = #tpu.pipeline_mode<synchronous>, transform_indices = @transform_10, window_bounds = array<i64: 128, 128>}, {pipeline_mode = #tpu.pipeline_mode<synchronous>, transform_indices = @transform_11, window_bounds = array<i64: 1, 128>}, {transform_indices = @transform_12, window_bounds = array<i64: 1, 16, 128>}, {transform_indices = @transform_13, window_bounds = array<i64: 1, 16, 128>}]} {
    %c0 = arith.constant 0 : index
    %c0_0 = arith.constant 0 : index
    %c0_1 = arith.constant 0 : index
    %0 = vector.load %arg2[%c0, %c0_0, %c0_1] : memref<1x128x128xf32, #tpu.memory_space<vmem>>, vector<1x128x128xf32>
    %1 = vector.shape_cast %0 : vector<1x128x128xf32> to vector<128x128xf32>
    %c0_2 = arith.constant 0 : index
    %c0_3 = arith.constant 0 : index
    %c0_4 = arith.constant 0 : index
    %2 = vector.load %arg3[%c0_2, %c0_3, %c0_4] : memref<1x16x128xf32, #tpu.memory_space<vmem>>, vector<1x16x128xf32>
    %3 = vector.shape_cast %2 : vector<1x16x128xf32> to vector<16x128xf32>
    %c0_5 = arith.constant 0 : index
    %c0_6 = arith.constant 0 : index
    %4 = vector.load %arg4[%c0_5, %c0_6] : memref<16x128xf32, #tpu.memory_space<vmem>>, vector<16x128xf32>
    %c0_i32 = arith.constant 0 : i32
    %5 = arith.cmpi eq, %arg1, %c0_i32 : i32
    %6 = arith.extui %5 : i1 to i32
    %c0_i32_7 = arith.constant 0 : i32
    %7 = arith.cmpi ne, %6, %c0_i32_7 : i32
    scf.if %7 {
      %71 = arith.truncf %1 : vector<128x128xf32> to vector<128x128xbf16>
      %c0_44 = arith.constant 0 : index
      %c0_45 = arith.constant 0 : index
      %72 = vector.load %arg8[%c0_44, %c0_45] : memref<128x128xbf16, #tpu.memory_space<vmem>>, vector<128x128xbf16>
      %cst_46 = arith.constant dense<0.000000e+00> : vector<128x128xf32>
      %73 = tpu.matmul %71, %72, %cst_46 {dimension_numbers = #tpu.dot_dimension_numbers<[1], [0], [0], [1], [0, 0, 1, 1], [], []>} : vector<128x128xbf16>, vector<128x128xbf16>, vector<128x128xf32> -> vector<128x128xf32>
      %74 = arith.truncf %73 : vector<128x128xf32> to vector<128x128xbf16>
      %c0_47 = arith.constant 0 : index
      %c0_48 = arith.constant 0 : index
      %75 = vector.load %arg16[%c0_47, %c0_48] : memref<128x128xbf16, #tpu.memory_space<vmem>>, vector<128x128xbf16>
      tpu.vector_store %arg16[%c0_47, %c0_48], %74 {strides = array<i32>} : memref<128x128xbf16, #tpu.memory_space<vmem>>, vector<128x128xbf16>,
    } else {
    }
    %c0_8 = arith.constant 0 : index
    %c0_9 = arith.constant 0 : index
    %8 = vector.load %arg5[%c0_8, %c0_9] : memref<1x128xf32, #tpu.memory_space<vmem>>, vector<1x128xf32>
    %9 = vector.broadcast %8 : vector<1x128xf32> to vector<16x128xf32>
    %10 = arith.mulf %3, %9 : vector<16x128xf32>
    %cst = arith.constant dense<0.000000e+00> : vector<16xf32>
    %11 = vector.multi_reduction <add>, %10, %cst [1] : vector<16x128xf32> to vector<16xf32>
    %12 = vector.shape_cast %11 : vector<16xf32> to vector<16x1xf32>
    %c0_10 = arith.constant 0 : index
    %c0_11 = arith.constant 0 : index
    %13 = vector.load %arg6[%c0_10, %c0_11] : memref<1x128xf32, #tpu.memory_space<vmem>>, vector<1x128xf32>
    %cst_12 = arith.constant dense<0.000000e+00> : vector<1x128xf32>
    %14 = tpu.matmul %13, %1, %cst_12 {dimension_numbers = #tpu.dot_dimension_numbers<[1], [1], [0], [0], [0, 0, 1, 0], [], []>} : vector<1x128xf32>, vector<128x128xf32>, vector<1x128xf32> -> vector<1x128xf32>
    %15 = vector.broadcast %12 : vector<16x1xf32> to vector<16x128xf32>
    %16 = vector.broadcast %14 : vector<1x128xf32> to vector<16x128xf32>
    %17 = arith.addf %15, %16 : vector<16x128xf32>
    %c0_13 = arith.constant 0 : index
    %c0_14 = arith.constant 0 : index
    %18 = vector.load %arg7[%c0_13, %c0_14] : memref<1x1xf32, #tpu.memory_space<vmem>>, vector<1x1xf32>
    %19 = vector.broadcast %18 : vector<1x1xf32> to vector<16x128xf32>
    %20 = arith.addf %17, %19 : vector<16x128xf32>
    %cst_15 = arith.constant 2.000000e-01 : f32
    %21 = vector.broadcast %cst_15 : f32 to vector<16x128xf32>
    %22 = arith.mulf %21, %20 : vector<16x128xf32>
    %23 = arith.maximumf %20, %22 : vector<16x128xf32>
    %cst_16 = arith.constant 0.000000e+00 : f32
    %24 = vector.broadcast %cst_16 : f32 to vector<16x128xf32>
    %25 = arith.cmpf ogt, %4, %24 : vector<16x128xf32>
    %cst_17 = arith.constant -1.000000e+30 : f32
    %26 = vector.broadcast %cst_17 : f32 to vector<16x128xf32>
    %27 = arith.select %25, %23, %26 : vector<16x128xi1>, vector<16x128xf32>
    %cst_18 = arith.constant dense<0xFF800000> : vector<16xf32>
    %28 = vector.multi_reduction <maximumf>, %27, %cst_18 [1] : vector<16x128xf32> to vector<16xf32>
    %29 = vector.shape_cast %28 : vector<16xf32> to vector<16x1xf32>
    %30 = vector.broadcast %29 : vector<16x1xf32> to vector<16x128xf32>
    %31 = arith.subf %27, %30 : vector<16x128xf32>
    %32 = math.exp %31 : vector<16x128xf32>
    %33 = arith.mulf %32, %4 : vector<16x128xf32>
    %cst_19 = arith.constant dense<0.000000e+00> : vector<16xf32>
    %34 = vector.multi_reduction <add>, %33, %cst_19 [1] : vector<16x128xf32> to vector<16xf32>
    %35 = vector.shape_cast %34 : vector<16xf32> to vector<16x1xf32>
    %cst_20 = arith.constant 9.99999971E-10 : f32
    %36 = vector.broadcast %cst_20 : f32 to vector<16x1xf32>
    %37 = arith.addf %35, %36 : vector<16x1xf32>
    %38 = tpu.reciprocal %37 {approx = true} : vector<16x1xf32> -> vector<16x1xf32>
    %39 = vector.broadcast %38 : vector<16x1xf32> to vector<16x128xf32>
    %40 = arith.mulf %33, %39 : vector<16x128xf32>
    %41 = arith.truncf %40 : vector<16x128xf32> to vector<16x128xbf16>
    %c0_21 = arith.constant 0 : index
    %c0_22 = arith.constant 0 : index
    %c0_23 = arith.constant 0 : index
    %42 = vector.load %arg15[%c0_21, %c0_22, %c0_23] : memref<1x16x128xbf16, #tpu.memory_space<vmem>>, vector<1x16x128xbf16>
    %43 = vector.shape_cast %42 : vector<1x16x128xbf16> to vector<16x128xbf16>
    %44 = vector.shape_cast %41 : vector<16x128xbf16> to vector<1x16x128xbf16>
    tpu.vector_store %arg15[%c0_21, %c0_22, %c0_23], %44 {strides = array<i32>} : memref<1x16x128xbf16, #tpu.memory_space<vmem>>, vector<1x16x128xbf16>,
    %45 = arith.truncf %3 : vector<16x128xf32> to vector<16x128xbf16>
    %c0_24 = arith.constant 0 : index
    %c0_25 = arith.constant 0 : index
    %46 = vector.load %arg9[%c0_24, %c0_25] : memref<128x128xbf16, #tpu.memory_space<vmem>>, vector<128x128xbf16>
    %cst_26 = arith.constant dense<0.000000e+00> : vector<16x128xf32>
    %47 = tpu.matmul %45, %46, %cst_26 {dimension_numbers = #tpu.dot_dimension_numbers<[1], [0], [0], [1], [0, 0, 1, 1], [], []>} : vector<16x128xbf16>, vector<128x128xbf16>, vector<16x128xf32> -> vector<16x128xf32>
    %c0_27 = arith.constant 0 : index
    %c0_28 = arith.constant 0 : index
    %48 = vector.load %arg10[%c0_27, %c0_28] : memref<1x128xf32, #tpu.memory_space<vmem>>, vector<1x128xf32>
    %49 = vector.broadcast %48 : vector<1x128xf32> to vector<16x128xf32>
    %50 = arith.addf %47, %49 : vector<16x128xf32>
    %51 = arith.mulf %35, %38 : vector<16x1xf32>
    %c0_29 = arith.constant 0 : index
    %c0_30 = arith.constant 0 : index
    %52 = vector.load %arg16[%c0_29, %c0_30] : memref<128x128xbf16, #tpu.memory_space<vmem>>, vector<128x128xbf16>
    %cst_31 = arith.constant dense<0.000000e+00> : vector<16x128xf32>
    %53 = tpu.matmul %41, %52, %cst_31 {dimension_numbers = #tpu.dot_dimension_numbers<[1], [0], [0], [1], [0, 0, 1, 1], [], []>} : vector<16x128xbf16>, vector<128x128xbf16>, vector<16x128xf32> -> vector<16x128xf32>
    %54 = vector.broadcast %51 : vector<16x1xf32> to vector<16x128xf32>
    %55 = arith.mulf %54, %50 : vector<16x128xf32>
    %56 = arith.addf %53, %55 : vector<16x128xf32>
    %c0_32 = arith.constant 0 : index
    %c0_33 = arith.constant 0 : index
    %57 = vector.load %arg11[%c0_32, %c0_33] : memref<128x128xbf16, #tpu.memory_space<vmem>>, vector<128x128xbf16>
    %cst_34 = arith.constant dense<0.000000e+00> : vector<16x128xf32>
    %58 = tpu.matmul %45, %57, %cst_34 {dimension_numbers = #tpu.dot_dimension_numbers<[1], [0], [0], [1], [0, 0, 1, 1], [], []>} : vector<16x128xbf16>, vector<128x128xbf16>, vector<16x128xf32> -> vector<16x128xf32>
    %59 = arith.truncf %56 : vector<16x128xf32> to vector<16x128xbf16>
    %c0_35 = arith.constant 0 : index
    %c0_36 = arith.constant 0 : index
    %60 = vector.load %arg12[%c0_35, %c0_36] : memref<128x128xbf16, #tpu.memory_space<vmem>>, vector<128x128xbf16>
    %cst_37 = arith.constant dense<0.000000e+00> : vector<16x128xf32>
    %61 = tpu.matmul %59, %60, %cst_37 {dimension_numbers = #tpu.dot_dimension_numbers<[1], [0], [0], [1], [0, 0, 1, 1], [], []>} : vector<16x128xbf16>, vector<128x128xbf16>, vector<16x128xf32> -> vector<16x128xf32>
    %62 = arith.addf %58, %61 : vector<16x128xf32>
    %c0_38 = arith.constant 0 : index
    %c0_39 = arith.constant 0 : index
    %63 = vector.load %arg13[%c0_38, %c0_39] : memref<1x128xf32, #tpu.memory_space<vmem>>, vector<1x128xf32>
    %64 = vector.broadcast %63 : vector<1x128xf32> to vector<16x128xf32>
    %65 = arith.addf %62, %64 : vector<16x128xf32>
    %cst_40 = arith.constant 0.000000e+00 : f32
    %66 = vector.broadcast %cst_40 : f32 to vector<16x128xf32>
    %67 = arith.maximumf %65, %66 : vector<16x128xf32>
    %c0_41 = arith.constant 0 : index
    %c0_42 = arith.constant 0 : index
    %c0_43 = arith.constant 0 : index
    %68 = vector.load %arg14[%c0_41, %c0_42, %c0_43] : memref<1x16x128xf32, #tpu.memory_space<vmem>>, vector<1x16x128xf32>
    %69 = vector.shape_cast %68 : vector<1x16x128xf32> to vector<16x128xf32>
    %70 = vector.shape_cast %67 : vector<16x128xf32> to vector<1x16x128xf32>
    tpu.vector_store %arg14[%c0_41, %c0_42, %c0_43], %70 {strides = array<i32>} : memref<1x16x128xf32, #tpu.memory_space<vmem>>, vector<1x16x128xf32>,
    return
  }
  func.func @transform_0(%arg0: i32, %arg1: i32) -> (i32, i32, i32) {
    %c0_i32 = arith.constant 0 : i32
    %c0_i32_0 = arith.constant 0 : i32
    %c0_i32_1 = arith.constant 0 : i32
    return %arg0, %c0_i32, %c0_i32_0 : i32, i32, i32
  }
  func.func @transform_1(%arg0: i32, %arg1: i32) -> (i32, i32, i32) {
    %c0_i32 = arith.constant 0 : i32
    %c0_i32_0 = arith.constant 0 : i32
    return %arg0, %arg1, %c0_i32 : i32, i32, i32
  }
  func.func @transform_2(%arg0: i32, %arg1: i32) -> (i32, i32) {
    %c0_i32 = arith.constant 0 : i32
    %c0_i32_0 = arith.constant 0 : i32
    return %arg1, %c0_i32 : i32, i32
  }
  func.func @transform_3(%arg0: i32, %arg1: i32) -> (i32, i32) {
    %c0_i32 = arith.constant 0 : i32
    %c0_i32_0 = arith.constant 0 : i32
    %c0_i32_1 = arith.constant 0 : i32
    return %c0_i32, %c0_i32_0 : i32, i32
  }
  func.func @transform_4(%arg0: i32, %arg1: i32) -> (i32, i32) {
    %c0_i32 = arith.constant 0 : i32
    %c0_i32_0 = arith.constant 0 : i32
    %c0_i32_1 = arith.constant 0 : i32
    return %c0_i32, %c0_i32_0 : i32, i32
  }
  func.func @transform_5(%arg0: i32, %arg1: i32) -> (i32, i32) {
    %c0_i32 = arith.constant 0 : i32
    %c0_i32_0 = arith.constant 0 : i32
    %c0_i32_1 = arith.constant 0 : i32
    return %c0_i32, %c0_i32_0 : i32, i32
  }
  func.func @transform_6(%arg0: i32, %arg1: i32) -> (i32, i32) {
    %c0_i32 = arith.constant 0 : i32
    %c0_i32_0 = arith.constant 0 : i32
    %c0_i32_1 = arith.constant 0 : i32
    return %c0_i32, %c0_i32_0 : i32, i32
  }
  func.func @transform_7(%arg0: i32, %arg1: i32) -> (i32, i32) {
    %c0_i32 = arith.constant 0 : i32
    %c0_i32_0 = arith.constant 0 : i32
    %c0_i32_1 = arith.constant 0 : i32
    return %c0_i32, %c0_i32_0 : i32, i32
  }
  func.func @transform_8(%arg0: i32, %arg1: i32) -> (i32, i32) {
    %c0_i32 = arith.constant 0 : i32
    %c0_i32_0 = arith.constant 0 : i32
    %c0_i32_1 = arith.constant 0 : i32
    return %c0_i32, %c0_i32_0 : i32, i32
  }
  func.func @transform_9(%arg0: i32, %arg1: i32) -> (i32, i32) {
    %c0_i32 = arith.constant 0 : i32
    %c0_i32_0 = arith.constant 0 : i32
    %c0_i32_1 = arith.constant 0 : i32
    return %c0_i32, %c0_i32_0 : i32, i32
  }
  func.func @transform_10(%arg0: i32, %arg1: i32) -> (i32, i32) {
    %c0_i32 = arith.constant 0 : i32
    %c0_i32_0 = arith.constant 0 : i32
    %c0_i32_1 = arith.constant 0 : i32
    return %c0_i32, %c0_i32_0 : i32, i32
  }
  func.func @transform_11(%arg0: i32, %arg1: i32) -> (i32, i32) {
    %c0_i32 = arith.constant 0 : i32
    %c0_i32_0 = arith.constant 0 : i32
    %c0_i32_1 = arith.constant 0 : i32
    return %c0_i32, %c0_i32_0 : i32, i32
  }
  func.func @transform_12(%arg0: i32, %arg1: i32) -> (i32, i32, i32) {
    %c0_i32 = arith.constant 0 : i32
    %c0_i32_0 = arith.constant 0 : i32
    return %arg0, %arg1, %c0_i32 : i32, i32, i32
  }
  func.func @transform_13(%arg0: i32, %arg1: i32) -> (i32, i32, i32) {
    %c0_i32 = arith.constant 0 : i32
    %c0_i32_0 = arith.constant 0 : i32
    return %arg0, %arg1, %c0_i32 : i32, i32, i32
  }
}

</mosaic_0001>

<llo_original>
// kernel: gnn_block_check_forward.1
$region0: #{gnn_block_check_forward.1}
  #allocation0 [shape = 'u32[]', space=smem, size = 0x4, offset = 0x4, fixed_abs, tag = 'smem constant byte address 0x4 - core index']
  #allocation1 [shape = 'u32[144,128]{1,0:T(1,128)}', space=vmem, size = 0x12000, scoped, tag = 'internal scratch']
  #allocation2 [shape = 'bf16[128,128]{1,0:T(16,128)(2,1)}', space=vmem, size = 0x8000, scoped, tag = 'scratch operand']
  #allocation3 [shape = 'f32[1,1]{1,0:T(1,128)S(1)}', space=vmem, size = 0x200, scoped, tag = 'scoped memory for gnn_block_check_forward.1']
  %s0 = inlined_call_operand.hbm [shape: f32[8,128,128], index: 0, kind: input, shape index: {}]
  %s1 = inlined_call_operand.hbm [shape: f32[8,16,128], index: 1, kind: input, shape index: {}]
  %s2 = inlined_call_operand.hbm [shape: f32[16,128], index: 2, kind: input, shape index: {}]
  %s3 = inlined_call_operand.hbm [shape: f32[1,128], index: 3, kind: input, shape index: {}]
  %s4 = inlined_call_operand.hbm [shape: f32[1,128], index: 4, kind: input, shape index: {}]
  %s5 = inlined_call_operand.<no memory space> [shape: f32[1,1], index: 5, kind: input, shape index: {}]
  %s6 = inlined_call_operand.hbm [shape: bf16[128,128], index: 6, kind: input, shape index: {}]
  %s7 = inlined_call_operand.hbm [shape: bf16[128,128], index: 7, kind: input, shape index: {}]
  %s8 = inlined_call_operand.hbm [shape: f32[1,128], index: 8, kind: input, shape index: {}]
  %s9 = inlined_call_operand.hbm [shape: bf16[128,128], index: 9, kind: input, shape index: {}]
  %s10 = inlined_call_operand.hbm [shape: bf16[128,128], index: 10, kind: input, shape index: {}]
  %s11 = inlined_call_operand.hbm [shape: f32[1,128], index: 11, kind: input, shape index: {}]
  %s12 = inlined_call_operand.hbm [shape: f32[8,16,128], index: 12, kind: output, shape index: {0}]
  %s13 = inlined_call_operand.hbm [shape: bf16[8,16,128], index: 13, kind: output, shape index: {1}]
  %14 = xla_tuple %s12, %s13
  %s15 = sld [smem:[#allocation0]]
  $region137: #{gnn_block_check_forward.1} parent=0
    _
  %s17 = ssub.s32 1, %s15
  %s18 = scalar_select 0, %s17, %s15
  %v19 = vstv %s5
  %20 = vst [vmem:[#allocation3] sm:$0x1] %v19
  $region1: #{gnn_block_check_forward.1} parent=0
    #allocation4 [shape = 'u8[131072]{0}', space=vmem, size = 0x20000, scoped, tag = 'input window, operand 0']
    #allocation5 [shape = 's32[2]{0}', space=sflag, size = 0x8, scoped, tag = 'scoped memory for gnn_block_check_forward.1']
    #allocation6 [shape = 's32[2]{0}', space=sflag, size = 0x8, scoped, tag = 'scoped memory for gnn_block_check_forward.1']
    #allocation7 [shape = 'u8[16384]{0}', space=vmem, size = 0x4000, scoped, tag = 'input window, operand 1']
    #allocation8 [shape = 's32[2]{0}', space=sflag, size = 0x8, scoped, tag = 'scoped memory for gnn_block_check_forward.1']
    #allocation9 [shape = 'u8[8192]{0}', space=vmem, size = 0x2000, scoped, tag = 'input window, operand 2, single buffered']
    #allocation10 [shape = 'u8[512]{0}', space=vmem, size = 0x400, scoped, tag = 'input window, operand 3, single buffered']
    #allocation11 [shape = 's32[1]{0}', space=sflag, size = 0x4, scoped, tag = 'scoped memory for gnn_block_check_forward.1']
    #allocation12 [shape = 'u8[512]{0}', space=vmem, size = 0x400, scoped, tag = 'input window, operand 4, single buffered']
    #allocation13 [shape = 'u8[32768]{0}', space=vmem, size = 0x8000, scoped, tag = 'input window, operand 6, single buffered']
    #allocation14 [shape = 's32[1]{0}', space=sflag, size = 0x4, scoped, tag = 'scoped memory for gnn_block_check_forward.1']
    #allocation15 [shape = 'u8[32768]{0}', space=vmem, size = 0x8000, scoped, tag = 'input window, operand 7, single buffered']
    #allocation16 [shape = 'u8[512]{0}', space=vmem, size = 0x400, scoped, tag = 'input window, operand 8, single buffered']
    #allocation17 [shape = 's32[1]{0}', space=sflag, size = 0x4, scoped, tag = 'scoped memory for gnn_block_check_forward.1']
    #allocation18 [shape = 'u8[32768]{0}', space=vmem, size = 0x8000, scoped, tag = 'input window, operand 9, single buffered']
    #allocation19 [shape = 'u8[32768]{0}', space=vmem, size = 0x8000, scoped, tag = 'input window, operand 10, single buffered']
    #allocation20 [shape = 's32[1]{0}', space=sflag, size = 0x4, scoped, tag = 'scoped memory for gnn_block_check_forward.1']
    #allocation21 [shape = 'u8[512]{0}', space=vmem, size = 0x400, scoped, tag = 'input window, operand 11, single buffered']
    #allocation22 [shape = 'u8[16384]{0}', space=vmem, size = 0x4000, scoped, tag = 'output window, operand 0']
    #allocation23 [shape = 'u8[8192]{0}', space=vmem, size = 0x2000, scoped, tag = 'output window, operand 1']
    #allocation24 [shape = 's32[2]{0}', space=sflag, size = 0x8, scoped, tag = 'scoped memory for gnn_block_check_forward.1']
    %21 = vsyncpa [#allocation5], 0
    %s22 = scalar_lea.sflag [#allocation5], 1
    %23 = vsyncpa %s22, 0
    %24 = vsyncpa [#allocation8], 0
    %s25 = scalar_lea.sflag [#allocation8], 1
    %26 = vsyncpa %s25, 0
    %27 = vsyncpa [#allocation11], 0
    %28 = vsyncpa [#allocation14], 0
    %29 = vsyncpa [#allocation17], 0
    %30 = vsyncpa [#allocation20], 0
    %31 = vsyncpa [#allocation6], 0
    %s32 = scalar_lea.sflag [#allocation6], 1
    %33 = vsyncpa %s32, 0
    %34 = vsyncpa [#allocation24], 0
    %s35 = scalar_lea.sflag [#allocation24], 1
    %36 = vsyncpa %s35, 0
    loop: start=0, step=1, limit=10
    $region2: #{gnn_block_check_forward.1} parent=1 // loop_pre_header
      _
    $region3: #{gnn_block_check_forward.1} parent=1 // loop_header
      %s38 = sphi 0, %s42
      %p39 = scmp.ge.s32.totalorder %s38, 10
      %s45 = sphi 0, %s57
      %s46 = sphi 0, %s53
      %s47 = sphi 0, %s45
      %s48 = sphi 0, %s46
      %s49 = sphi 0, %s47
      %s50 = sphi 0, %s48
      %s60 = sphi 0, %s62
      %s63 = sphi 0, %s60
      %s64 = sphi 0, %s63
      %s80 = sphi 0, %s64
      %s88 = sphi 0, %s90
      %s91 = sphi 0, %s88
      %s92 = sphi 0, %s91
      %s108 = sphi 0, %s92
      %s114 = sphi 0, %s116
      %s117 = sphi 0, %s114
      %s118 = sphi 0, %s117
      %s134 = sphi 0, %s118
      %s138 = sphi 0, %s138
      %s140 = sphi 0, %s138
      %s141 = sphi 0, %s140
      %s155 = sphi 0, %s141
      %s159 = sphi 0, %s159
      %s161 = sphi 0, %s159
      %s162 = sphi 0, %s161
      %s176 = sphi 0, %s162
      %s180 = sphi 0, %s180
      %s182 = sphi 0, %s180
      %s183 = sphi 0, %s182
      %s197 = sphi 0, %s183
      %s201 = sphi 0, %s201
      %s203 = sphi 0, %s201
      %s204 = sphi 0, %s203
      %s218 = sphi 0, %s204
      %s222 = sphi 0, %s222
      %s224 = sphi 0, %s222
      %s225 = sphi 0, %s224
      %s239 = sphi 0, %s225
      %s243 = sphi 0, %s243
      %s245 = sphi 0, %s243
      %s246 = sphi 0, %s245
      %s260 = sphi 0, %s246
      %s264 = sphi 0, %s264
      %s266 = sphi 0, %s264
      %s267 = sphi 0, %s266
      %s281 = sphi 0, %s267
      %s285 = sphi 0, %s285
      %s287 = sphi 0, %s285
      %s288 = sphi 0, %s287
      %s302 = sphi 0, %s288
      %s306 = sphi 0, %s306
      %s308 = sphi 0, %s306
      %s309 = sphi 0, %s308
      %s323 = sphi 0, %s309
      %s331 = sphi 0, %s333
      %s334 = sphi 0, %s331
      %s335 = sphi 0, %s334
      %s351 = sphi 0, %s335
      %s359 = sphi 0, %s361
      %s362 = sphi 0, %s359
      %s363 = sphi 0, %s362
      %s379 = sphi 0, %s363
    $region4: #{gnn_block_check_forward.1} parent=1 // loop_header_branch
      %41 = sbr.rel (%p39) target = $region8
    $region5: #{gnn_block_check_forward.1} parent=1 // loop_body
      %s43 = ssub.s32 %s38, 1
      %s44 = ssub.s32 %s38, 2
      %s51 = sadd.s32 1, %s46
      %p52 = scmp.ge.s32.totalorder %s51, 1
      %s53 = scalar_select %p52, 0, %s51
      %s54 = sadd.s32 1, %s45
      %s55 = scalar_select %p52, %s54, %s45
      %p56 = scmp.ge.s32.totalorder %s55, 8
      %s57 = scalar_select %p56, 0, %s55
      %s58 = ssub.s32 %s45, %s57
      %p59 = scmp.eq.s32.totalorder %s58, 0
      %s61 = sadd.s32 %s60, 1
      %s62 = scalar_select %p59, %s60, %s61
      %p65 = pneg %p59
      %p66 = scmp.eq.s32.totalorder %s38, 7
      %p67 = por %p65, %p66
      %p68 = scmp.ne.s32.totalorder %s60, %s63
      %p69 = scmp.eq.s32.totalorder %s38, 0
      %p70 = por %p68, %p69
      %p71 = scmp.ne.s32.totalorder %s60, %s63
      %p72 = scmp.eq.s32.totalorder %s43, 7
      %p73 = por %p71, %p72
      %p74 = scmp.ne.s32.totalorder %s63, %s64
      %p75 = scmp.eq.s32.totalorder %s43, 0
      %p76 = por %p74, %p75
      %p77 = scmp.ne.s32.totalorder %s63, %s64
      %p78 = scmp.eq.s32.totalorder %s44, 7
      %p79 = por %p77, %p78
      %p81 = scmp.ne.s32.totalorder %s64, %s80
      %p82 = scmp.eq.s32.totalorder %s44, 0
      %p83 = por %p81, %p82
      %s84 = ssub.s32 %s45, %s57
      %s85 = ssub.s32 %s46, %s53
      %s86 = sor.u32 %s84, %s85
      %p87 = scmp.eq.s32.totalorder %s86, 0
      %s89 = sadd.s32 %s88, 1
      %s90 = scalar_select %p87, %s88, %s89
      %p93 = pneg %p87
      %p94 = scmp.eq.s32.totalorder %s38, 7
      %p95 = por %p93, %p94
      %p96 = scmp.ne.s32.totalorder %s88, %s91
      %p97 = scmp.eq.s32.totalorder %s38, 0
      %p98 = por %p96, %p97
      %p99 = scmp.ne.s32.totalorder %s88, %s91
      %p100 = scmp.eq.s32.totalorder %s43, 7
      %p101 = por %p99, %p100
      %p102 = scmp.ne.s32.totalorder %s91, %s92
      %p103 = scmp.eq.s32.totalorder %s43, 0
      %p104 = por %p102, %p103
      %p105 = scmp.ne.s32.totalorder %s91, %s92
      %p106 = scmp.eq.s32.totalorder %s44, 7
      %p107 = por %p105, %p106
      %p109 = scmp.ne.s32.totalorder %s92, %s108
      %p110 = scmp.eq.s32.totalorder %s44, 0
      %p111 = por %p109, %p110
      %s112 = ssub.s32 %s46, %s53
      %p113 = scmp.eq.s32.totalorder %s112, 0
      %s115 = sadd.s32 %s114, 1
      %s116 = scalar_select %p113, %s114, %s115
      %p119 = pneg %p113
      %p120 = scmp.eq.s32.totalorder %s38, 7
      %p121 = por %p119, %p120
      %p122 = scmp.ne.s32.totalorder %s114, %s117
      %p123 = scmp.eq.s32.totalorder %s38, 0
      %p124 = por %p122, %p123
      %p125 = scmp.ne.s32.totalorder %s114, %s117
      %p126 = scmp.eq.s32.totalorder %s43, 7
      %p127 = por %p125, %p126
      %p128 = scmp.ne.s32.totalorder %s117, %s118
      %p129 = scmp.eq.s32.totalorder %s43, 0
      %p130 = por %p128, %p129
      %p131 = scmp.ne.s32.totalorder %s117, %s118
      %p132 = scmp.eq.s32.totalorder %s44, 7
      %p133 = por %p131, %p132
      %p135 = scmp.ne.s32.totalorder %s118, %s134
      %p136 = scmp.eq.s32.totalorder %s44, 0
      %p137 = por %p135, %p136
      %s139 = sadd.s32 %s138, 1
      %p142 = scmp.eq.s32.totalorder %s38, 7
      %p143 = scmp.ne.s32.totalorder %s138, %s140
      %p144 = scmp.eq.s32.totalorder %s38, 0
      %p145 = por %p143, %p144
      %p146 = scmp.ne.s32.totalorder %s138, %s140
      %p147 = scmp.eq.s32.totalorder %s43, 7
      %p148 = por %p146, %p147
      %p149 = scmp.ne.s32.totalorder %s140, %s141
      %p150 = scmp.eq.s32.totalorder %s43, 0
      %p151 = por %p149, %p150
      %p152 = scmp.ne.s32.totalorder %s140, %s141
      %p153 = scmp.eq.s32.totalorder %s44, 7
      %p154 = por %p152, %p153
      %p156 = scmp.ne.s32.totalorder %s141, %s155
      %p157 = scmp.eq.s32.totalorder %s44, 0
      %p158 = por %p156, %p157
      %s160 = sadd.s32 %s159, 1
      %p163 = scmp.eq.s32.totalorder %s38, 7
      %p164 = scmp.ne.s32.totalorder %s159, %s161
      %p165 = scmp.eq.s32.totalorder %s38, 0
      %p166 = por %p164, %p165
      %p167 = scmp.ne.s32.totalorder %s159, %s161
      %p168 = scmp.eq.s32.totalorder %s43, 7
      %p169 = por %p167, %p168
      %p170 = scmp.ne.s32.totalorder %s161, %s162
      %p171 = scmp.eq.s32.totalorder %s43, 0
      %p172 = por %p170, %p171
      %p173 = scmp.ne.s32.totalorder %s161, %s162
      %p174 = scmp.eq.s32.totalorder %s44, 7
      %p175 = por %p173, %p174
      %p177 = scmp.ne.s32.totalorder %s162, %s176
      %p178 = scmp.eq.s32.totalorder %s44, 0
      %p179 = por %p177, %p178
      %s181 = sadd.s32 %s180, 1
      %p184 = scmp.eq.s32.totalorder %s38, 7
      %p185 = scmp.ne.s32.totalorder %s180, %s182
      %p186 = scmp.eq.s32.totalorder %s38, 0
      %p187 = por %p185, %p186
      %p188 = scmp.ne.s32.totalorder %s180, %s182
      %p189 = scmp.eq.s32.totalorder %s43, 7
      %p190 = por %p188, %p189
      %p191 = scmp.ne.s32.totalorder %s182, %s183
      %p192 = scmp.eq.s32.totalorder %s43, 0
      %p193 = por %p191, %p192
      %p194 = scmp.ne.s32.totalorder %s182, %s183
      %p195 = scmp.eq.s32.totalorder %s44, 7
      %p196 = por %p194, %p195
      %p198 = scmp.ne.s32.totalorder %s183, %s197
      %p199 = scmp.eq.s32.totalorder %s44, 0
      %p200 = por %p198, %p199
      %s202 = sadd.s32 %s201, 1
      %p205 = scmp.eq.s32.totalorder %s38, 7
      %p206 = scmp.ne.s32.totalorder %s201, %s203
      %p207 = scmp.eq.s32.totalorder %s38, 0
      %p208 = por %p206, %p207
      %p209 = scmp.ne.s32.totalorder %s201, %s203
      %p210 = scmp.eq.s32.totalorder %s43, 7
      %p211 = por %p209, %p210
      %p212 = scmp.ne.s32.totalorder %s203, %s204
      %p213 = scmp.eq.s32.totalorder %s43, 0
      %p214 = por %p212, %p213
      %p215 = scmp.ne.s32.totalorder %s203, %s204
      %p216 = scmp.eq.s32.totalorder %s44, 7
      %p217 = por %p215, %p216
      %p219 = scmp.ne.s32.totalorder %s204, %s218
      %p220 = scmp.eq.s32.totalorder %s44, 0
      %p221 = por %p219, %p220
      %s223 = sadd.s32 %s222, 1
      %p226 = scmp.eq.s32.totalorder %s38, 7
      %p227 = scmp.ne.s32.totalorder %s222, %s224
      %p228 = scmp.eq.s32.totalorder %s38, 0
      %p229 = por %p227, %p228
      %p230 = scmp.ne.s32.totalorder %s222, %s224
      %p231 = scmp.eq.s32.totalorder %s43, 7
      %p232 = por %p230, %p231
      %p233 = scmp.ne.s32.totalorder %s224, %s225
      %p234 = scmp.eq.s32.totalorder %s43, 0
      %p235 = por %p233, %p234
      %p236 = scmp.ne.s32.totalorder %s224, %s225
      %p237 = scmp.eq.s32.totalorder %s44, 7
      %p238 = por %p236, %p237
      %p240 = scmp.ne.s32.totalorder %s225, %s239
      %p241 = scmp.eq.s32.totalorder %s44, 0
      %p242 = por %p240, %p241
      %s244 = sadd.s32 %s243, 1
      %p247 = scmp.eq.s32.totalorder %s38, 7
      %p248 = scmp.ne.s32.totalorder %s243, %s245
      %p249 = scmp.eq.s32.totalorder %s38, 0
      %p250 = por %p248, %p249
      %p251 = scmp.ne.s32.totalorder %s243, %s245
      %p252 = scmp.eq.s32.totalorder %s43, 7
      %p253 = por %p251, %p252
      %p254 = scmp.ne.s32.totalorder %s245, %s246
      %p255 = scmp.eq.s32.totalorder %s43, 0
      %p256 = por %p254, %p255
      %p257 = scmp.ne.s32.totalorder %s245, %s246
      %p258 = scmp.eq.s32.totalorder %s44, 7
      %p259 = por %p257, %p258
      %p261 = scmp.ne.s32.totalorder %s246, %s260
      %p262 = scmp.eq.s32.totalorder %s44, 0
      %p263 = por %p261, %p262
      %s265 = sadd.s32 %s264, 1
      %p268 = scmp.eq.s32.totalorder %s38, 7
      %p269 = scmp.ne.s32.totalorder %s264, %s266
      %p270 = scmp.eq.s32.totalorder %s38, 0
      %p271 = por %p269, %p270
      %p272 = scmp.ne.s32.totalorder %s264, %s266
      %p273 = scmp.eq.s32.totalorder %s43, 7
      %p274 = por %p272, %p273
      %p275 = scmp.ne.s32.totalorder %s266, %s267
      %p276 = scmp.eq.s32.totalorder %s43, 0
      %p277 = por %p275, %p276
      %p278 = scmp.ne.s32.totalorder %s266, %s267
      %p279 = scmp.eq.s32.totalorder %s44, 7
      %p280 = por %p278, %p279
      %p282 = scmp.ne.s32.totalorder %s267, %s281
      %p283 = scmp.eq.s32.totalorder %s44, 0
      %p284 = por %p282, %p283
      %s286 = sadd.s32 %s285, 1
      %p289 = scmp.eq.s32.totalorder %s38, 7
      %p290 = scmp.ne.s32.totalorder %s285, %s287
      %p291 = scmp.eq.s32.totalorder %s38, 0
      %p292 = por %p290, %p291
      %p293 = scmp.ne.s32.totalorder %s285, %s287
      %p294 = scmp.eq.s32.totalorder %s43, 7
      %p295 = por %p293, %p294
      %p296 = scmp.ne.s32.totalorder %s287, %s288
      %p297 = scmp.eq.s32.totalorder %s43, 0
      %p298 = por %p296, %p297
      %p299 = scmp.ne.s32.totalorder %s287, %s288
      %p300 = scmp.eq.s32.totalorder %s44, 7
      %p301 = por %p299, %p300
      %p303 = scmp.ne.s32.totalorder %s288, %s302
      %p304 = scmp.eq.s32.totalorder %s44, 0
      %p305 = por %p303, %p304
      %s307 = sadd.s32 %s306, 1
      %p310 = scmp.eq.s32.totalorder %s38, 7
      %p311 = scmp.ne.s32.totalorder %s306, %s308
      %p312 = scmp.eq.s32.totalorder %s38, 0
      %p313 = por %p311, %p312
      %p314 = scmp.ne.s32.totalorder %s306, %s308
      %p315 = scmp.eq.s32.totalorder %s43, 7
      %p316 = por %p314, %p315
      %p317 = scmp.ne.s32.totalorder %s308, %s309
      %p318 = scmp.eq.s32.totalorder %s43, 0
      %p319 = por %p317, %p318
      %p320 = scmp.ne.s32.totalorder %s308, %s309
      %p321 = scmp.eq.s32.totalorder %s44, 7
      %p322 = por %p320, %p321
      %p324 = scmp.ne.s32.totalorder %s309, %s323
      %p325 = scmp.eq.s32.totalorder %s44, 0
      %p326 = por %p324, %p325
      %s327 = ssub.s32 %s45, %s57
      %s328 = ssub.s32 %s46, %s53
      %s329 = sor.u32 %s327, %s328
      %p330 = scmp.eq.s32.totalorder %s329, 0
      %s332 = sadd.s32 %s331, 1
      %s333 = scalar_select %p330, %s331, %s332
      %p336 = pneg %p330
      %p337 = scmp.eq.s32.totalorder %s38, 7
      %p338 = por %p336, %p337
      %p339 = scmp.ne.s32.totalorder %s331, %s334
      %p340 = scmp.eq.s32.totalorder %s38, 0
      %p341 = por %p339, %p340
      %p342 = scmp.ne.s32.totalorder %s331, %s334
      %p343 = scmp.eq.s32.totalorder %s43, 7
      %p344 = por %p342, %p343
      %p345 = scmp.ne.s32.totalorder %s334, %s335
      %p346 = scmp.eq.s32.totalorder %s43, 0
      %p347 = por %p345, %p346
      %p348 = scmp.ne.s32.totalorder %s334, %s335
      %p349 = scmp.eq.s32.totalorder %s44, 7
      %p350 = por %p348, %p349
      %p352 = scmp.ne.s32.totalorder %s335, %s351
      %p353 = scmp.eq.s32.totalorder %s44, 0
      %p354 = por %p352, %p353
      %s355 = ssub.s32 %s45, %s57
      %s356 = ssub.s32 %s46, %s53
      %s357 = sor.u32 %s355, %s356
      %p358 = scmp.eq.s32.totalorder %s357, 0
      %s360 = sadd.s32 %s359, 1
      %s361 = scalar_select %p358, %s359, %s360
      %p364 = pneg %p358
      %p365 = scmp.eq.s32.totalorder %s38, 7
      %p366 = por %p364, %p365
      %p367 = scmp.ne.s32.totalorder %s359, %s362
      %p368 = scmp.eq.s32.totalorder %s38, 0
      %p369 = por %p367, %p368
      %p370 = scmp.ne.s32.totalorder %s359, %s362
      %p371 = scmp.eq.s32.totalorder %s43, 7
      %p372 = por %p370, %p371
      %p373 = scmp.ne.s32.totalorder %s362, %s363
      %p374 = scmp.eq.s32.totalorder %s43, 0
      %p375 = por %p373, %p374
      %p376 = scmp.ne.s32.totalorder %s362, %s363
      %p377 = scmp.eq.s32.totalorder %s44, 7
      %p378 = por %p376, %p377
      %p380 = scmp.ne.s32.totalorder %s363, %s379
      %p381 = scmp.eq.s32.totalorder %s44, 0
      %p382 = por %p380, %p381
      %p383 = scmp.le.s32.totalorder 1, %s38
      %p384 = scmp.lt.s32.totalorder %s38, 9
      %p385 = pnand %p383, %p384
      %p386 = pneg %p385
      // Predicated region
      $region9: #{gnn_block_check_forward.1} parent=5 // pred_check
        _
      $region10: #{gnn_block_check_forward.1} parent=5 // pred_check_branch
        %388 = sbr.rel (%p385) target = $region12
      $region11: #{gnn_block_check_forward.1} parent=5 // pred_region
        %s389 = ssub.s32 %s38, 1
        // Predicated region
        $region13: #{gnn_block_check_forward.1} parent=11 // pred_check
          %p390 = pneg %p130
        $region14: #{gnn_block_check_forward.1} parent=11 // pred_check_branch
          %392 = sbr.rel (%p390) target = $region16
        $region15: #{gnn_block_check_forward.1} parent=11 // pred_region
          %s393 = smul.u32 2, %s48
          %s395 = ssub.s32 256, 256
          %396 = vsyncadd [#allocation8], %s395
          %s397 = smul.addr %s393, 128
          %s398 = scalar_lea.hbm %s2, %s397
          %s399 = sshll.u32 [#allocation9], 4
          %s400 = int_to_ptr.vmem [resolvable:$true] %s399
          %405 = dma.hbm_to_vmem [thread:$0]  %s398, 256, %s400, [#allocation8], 128, 128, 8
        $region16: #{gnn_block_check_forward.1} parent=11 // pred_fallthru
          _
        // Predicated region
        $region17: #{gnn_block_check_forward.1} parent=11 // pred_check
          %p406 = pneg %p151
        $region18: #{gnn_block_check_forward.1} parent=11 // pred_check_branch
          %408 = sbr.rel (%p406) target = $region20
        $region19: #{gnn_block_check_forward.1} parent=11 // pred_region
          %s410 = ssub.s32 16, 16
          %411 = vsyncadd [#allocation11], %s410
          %s413 = sshll.u32 [#allocation10], 4
          %s414 = int_to_ptr.vmem [resolvable:$true] %s413
          %416 = dma.hbm_to_vmem [thread:$0]  %s3, 16, %s414, [#allocation11]
        $region20: #{gnn_block_check_forward.1} parent=11 // pred_fallthru
          _
        // Predicated region
        $region21: #{gnn_block_check_forward.1} parent=11 // pred_check
          %p417 = pneg %p172
        $region22: #{gnn_block_check_forward.1} parent=11 // pred_check_branch
          %419 = sbr.rel (%p417) target = $region24
        $region23: #{gnn_block_check_forward.1} parent=11 // pred_region
          %s421 = ssub.s32 16, 16
          %422 = vsyncadd [#allocation11], %s421
          %s424 = sshll.u32 [#allocation12], 4
          %s425 = int_to_ptr.vmem [resolvable:$true] %s424
          %427 = dma.hbm_to_vmem [thread:$0]  %s4, 16, %s425, [#allocation11]
        $region24: #{gnn_block_check_forward.1} parent=11 // pred_fallthru
          _
        // Predicated region
        $region25: #{gnn_block_check_forward.1} parent=11 // pred_check
          %p428 = pneg %p193
        $region26: #{gnn_block_check_forward.1} parent=11 // pred_check_branch
          %430 = sbr.rel (%p428) target = $region28
        $region27: #{gnn_block_check_forward.1} parent=11 // pred_region
          _
        $region28: #{gnn_block_check_forward.1} parent=11 // pred_fallthru
          _
        // Predicated region
        $region29: #{gnn_block_check_forward.1} parent=11 // pred_check
          %p431 = pneg %p214
        $region30: #{gnn_block_check_forward.1} parent=11 // pred_check_branch
          %433 = sbr.rel (%p431) target = $region32
        $region31: #{gnn_block_check_forward.1} parent=11 // pred_region
          %s435 = ssub.s32 1024, 1024
          %436 = vsyncadd [#allocation14], %s435
          %s437 = sshll.u32 [#allocation13], 4
          %s438 = int_to_ptr.vmem [resolvable:$true] %s437
          %443 = dma.hbm_to_vmem [thread:$0]  %s6, 1024, %s438, [#allocation14], 64, 64, 4
        $region32: #{gnn_block_check_forward.1} parent=11 // pred_fallthru
          _
        // Predicated region
        $region33: #{gnn_block_check_forward.1} parent=11 // pred_check
          %p444 = pneg %p235
        $region34: #{gnn_block_check_forward.1} parent=11 // pred_check_branch
          %446 = sbr.rel (%p444) target = $region36
        $region35: #{gnn_block_check_forward.1} parent=11 // pred_region
          %s448 = ssub.s32 1024, 1024
          %449 = vsyncadd [#allocation14], %s448
          %s450 = sshll.u32 [#allocation15], 4
          %s451 = int_to_ptr.vmem [resolvable:$true] %s450
          %456 = dma.hbm_to_vmem [thread:$0]  %s7, 1024, %s451, [#allocation14], 64, 64, 4
        $region36: #{gnn_block_check_forward.1} parent=11 // pred_fallthru
          _
        // Predicated region
        $region37: #{gnn_block_check_forward.1} parent=11 // pred_check
          %p457 = pneg %p256
        $region38: #{gnn_block_check_forward.1} parent=11 // pred_check_branch
          %459 = sbr.rel (%p457) target = $region40
        $region39: #{gnn_block_check_forward.1} parent=11 // pred_region
          %s461 = ssub.s32 16, 16
          %462 = vsyncadd [#allocation17], %s461
          %s464 = sshll.u32 [#allocation16], 4
          %s465 = int_to_ptr.vmem [resolvable:$true] %s464
          %467 = dma.hbm_to_vmem [thread:$0]  %s8, 16, %s465, [#allocation17]
        $region40: #{gnn_block_check_forward.1} parent=11 // pred_fallthru
          _
        // Predicated region
        $region41: #{gnn_block_check_forward.1} parent=11 // pred_check
          %p468 = pneg %p277
        $region42: #{gnn_block_check_forward.1} parent=11 // pred_check_branch
          %470 = sbr.rel (%p468) target = $region44
        $region43: #{gnn_block_check_forward.1} parent=11 // pred_region
          %s472 = ssub.s32 1024, 1024
          %473 = vsyncadd [#allocation17], %s472
          %s474 = sshll.u32 [#allocation18], 4
          %s475 = int_to_ptr.vmem [resolvable:$true] %s474
          %480 = dma.hbm_to_vmem [thread:$0]  %s9, 1024, %s475, [#allocation17], 64, 64, 4
        $region44: #{gnn_block_check_forward.1} parent=11 // pred_fallthru
          _
        // Predicated region
        $region45: #{gnn_block_check_forward.1} parent=11 // pred_check
          %p481 = pneg %p298
        $region46: #{gnn_block_check_forward.1} parent=11 // pred_check_branch
          %483 = sbr.rel (%p481) target = $region48
        $region47: #{gnn_block_check_forward.1} parent=11 // pred_region
          %s485 = ssub.s32 1024, 1024
          %486 = vsyncadd [#allocation20], %s485
          %s487 = sshll.u32 [#allocation19], 4
          %s488 = int_to_ptr.vmem [resolvable:$true] %s487
          %493 = dma.hbm_to_vmem [thread:$0]  %s10, 1024, %s488, [#allocation20], 64, 64, 4
        $region48: #{gnn_block_check_forward.1} parent=11 // pred_fallthru
          _
        // Predicated region
        $region49: #{gnn_block_check_forward.1} parent=11 // pred_check
          %p494 = pneg %p319
        $region50: #{gnn_block_check_forward.1} parent=11 // pred_check_branch
          %496 = sbr.rel (%p494) target = $region52
        $region51: #{gnn_block_check_forward.1} parent=11 // pred_region
          %s498 = ssub.s32 16, 16
          %499 = vsyncadd [#allocation20], %s498
          %s501 = sshll.u32 [#allocation21], 4
          %s502 = int_to_ptr.vmem [resolvable:$true] %s501
          %504 = dma.hbm_to_vmem [thread:$0]  %s11, 16, %s502, [#allocation20]
        $region52: #{gnn_block_check_forward.1} parent=11 // pred_fallthru
          _
      $region12: #{gnn_block_check_forward.1} parent=5 // pred_fallthru
        _
      %p505 = scmp.lt.s32.totalorder %s38, 8
      // Predicated region
      $region53: #{gnn_block_check_forward.1} parent=5 // pred_check
        %p506 = pneg %p505
      $region54: #{gnn_block_check_forward.1} parent=5 // pred_check_branch
        %508 = sbr.rel (%p506) target = $region56
      $region55: #{gnn_block_check_forward.1} parent=5 // pred_region
        // Predicated region
        $region57: #{gnn_block_check_forward.1} parent=55 // pred_check
          %p509 = pneg %p70
        $region58: #{gnn_block_check_forward.1} parent=55 // pred_check_branch
          %511 = sbr.rel (%p509) target = $region60
        $region59: #{gnn_block_check_forward.1} parent=55 // pred_region
          %s512 = sand.u32 %s60, 1
          %s513 = scalar_lea.sflag [#allocation5], %s512
          %s514 = sand.u32 %s60, 1
          %s515 = smul.addr %s514, 128
          %s516 = scalar_lea.vmem [#allocation4], %s515
          %s518 = ssub.s32 2048, 2048
          %519 = vsyncadd %s513, %s518
          %s520 = smul.addr %s45, 16
          %s521 = smul.addr %s520, 128
          %s522 = scalar_lea.hbm %s0, %s521
          %s523 = sshll.u32 %s516, 4
          %s524 = int_to_ptr.vmem [resolvable:$true] %s523
          %529 = dma.hbm_to_vmem [thread:$0]  %s522, 2048, %s524, %s513, 128, 128, 8
        $region60: #{gnn_block_check_forward.1} parent=55 // pred_fallthru
          _
        // Predicated region
        $region61: #{gnn_block_check_forward.1} parent=55 // pred_check
          %p530 = pneg %p98
        $region62: #{gnn_block_check_forward.1} parent=55 // pred_check_branch
          %532 = sbr.rel (%p530) target = $region64
        $region63: #{gnn_block_check_forward.1} parent=55 // pred_region
          %s533 = sand.u32 %s38, 1
          %s534 = scalar_lea.sflag [#allocation8], %s533
          %s535 = sand.u32 %s88, 1
          %s536 = smul.addr %s535, 16
          %s537 = scalar_lea.vmem [#allocation7], %s536
          %s538 = smul.u32 2, %s46
          %s540 = ssub.s32 256, 256
          %541 = vsyncadd %s534, %s540
          %s542 = smul.addr %s45, 2
          %s543 = sadd.s32 %s538, %s542
          %s544 = smul.addr %s543, 128
          %s545 = scalar_lea.hbm %s1, %s544
          %s546 = sshll.u32 %s537, 4
          %s547 = int_to_ptr.vmem [resolvable:$true] %s546
          %552 = dma.hbm_to_vmem [thread:$0]  %s545, 256, %s547, %s534, 128, 128, 8
        $region64: #{gnn_block_check_forward.1} parent=55 // pred_fallthru
          _
      $region56: #{gnn_block_check_forward.1} parent=5 // pred_fallthru
        _
      %p553 = scmp.le.s32.totalorder 1, %s38
      %p554 = scmp.lt.s32.totalorder %s38, 9
      %p555 = pnand %p553, %p554
      %p556 = pneg %p555
      // Predicated region
      $region65: #{gnn_block_check_forward.1} parent=5 // pred_check
        _
      $region66: #{gnn_block_check_forward.1} parent=5 // pred_check_branch
        %558 = sbr.rel (%p555) target = $region68
      $region67: #{gnn_block_check_forward.1} parent=5 // pred_region
        %s559 = ssub.s32 %s38, 1
        %s560 = sand.u32 %s63, 1
        %s561 = scalar_lea.sflag [#allocation5], %s560
        %s562 = sand.u32 %s63, 1
        %s563 = smul.addr %s562, 128
        %s564 = scalar_lea.vmem [#allocation4], %s563
        // Predicated region
        $region69: #{gnn_block_check_forward.1} parent=67 // pred_check
          %p565 = pneg %p76
        $region70: #{gnn_block_check_forward.1} parent=67 // pred_check_branch
          %567 = sbr.rel (%p565) target = $region72
        $region71: #{gnn_block_check_forward.1} parent=67 // pred_region
          %568 = dma.done %s561, 2048
        $region72: #{gnn_block_check_forward.1} parent=67 // pred_fallthru
          _
        %s569 = sand.u32 %s43, 1
        %s570 = scalar_lea.sflag [#allocation8], %s569
        %s571 = sand.u32 %s91, 1
        %s572 = smul.addr %s571, 16
        %s573 = scalar_lea.vmem [#allocation7], %s572
        // Predicated region
        $region73: #{gnn_block_check_forward.1} parent=67 // pred_check
          %p574 = pneg %p104
        $region74: #{gnn_block_check_forward.1} parent=67 // pred_check_branch
          %576 = sbr.rel (%p574) target = $region76
        $region75: #{gnn_block_check_forward.1} parent=67 // pred_region
          %577 = dma.done %s570, 256
        $region76: #{gnn_block_check_forward.1} parent=67 // pred_fallthru
          _
        // Predicated region
        $region77: #{gnn_block_check_forward.1} parent=67 // pred_check
          %p578 = pneg %p130
        $region78: #{gnn_block_check_forward.1} parent=67 // pred_check_branch
          %580 = sbr.rel (%p578) target = $region80
        $region79: #{gnn_block_check_forward.1} parent=67 // pred_region
          %581 = dma.done [#allocation8], 256
        $region80: #{gnn_block_check_forward.1} parent=67 // pred_fallthru
          _
        // Predicated region
        $region81: #{gnn_block_check_forward.1} parent=67 // pred_check
          %p582 = pneg %p151
        $region82: #{gnn_block_check_forward.1} parent=67 // pred_check_branch
          %584 = sbr.rel (%p582) target = $region84
        $region83: #{gnn_block_check_forward.1} parent=67 // pred_region
          %585 = dma.done [#allocation11], 16
        $region84: #{gnn_block_check_forward.1} parent=67 // pred_fallthru
          _
        // Predicated region
        $region85: #{gnn_block_check_forward.1} parent=67 // pred_check
          %p586 = pneg %p172
        $region86: #{gnn_block_check_forward.1} parent=67 // pred_check_branch
          %588 = sbr.rel (%p586) target = $region88
        $region87: #{gnn_block_check_forward.1} parent=67 // pred_region
          %589 = dma.done [#allocation11], 16
        $region88: #{gnn_block_check_forward.1} parent=67 // pred_fallthru
          _
        // Predicated region
        $region89: #{gnn_block_check_forward.1} parent=67 // pred_check
          %p590 = pneg %p214
        $region90: #{gnn_block_check_forward.1} parent=67 // pred_check_branch
          %592 = sbr.rel (%p590) target = $region92
        $region91: #{gnn_block_check_forward.1} parent=67 // pred_region
          %593 = dma.done [#allocation14], 1024
        $region92: #{gnn_block_check_forward.1} parent=67 // pred_fallthru
          _
        // Predicated region
        $region93: #{gnn_block_check_forward.1} parent=67 // pred_check
          %p594 = pneg %p235
        $region94: #{gnn_block_check_forward.1} parent=67 // pred_check_branch
          %596 = sbr.rel (%p594) target = $region96
        $region95: #{gnn_block_check_forward.1} parent=67 // pred_region
          %597 = dma.done [#allocation14], 1024
        $region96: #{gnn_block_check_forward.1} parent=67 // pred_fallthru
          _
        // Predicated region
        $region97: #{gnn_block_check_forward.1} parent=67 // pred_check
          %p598 = pneg %p256
        $region98: #{gnn_block_check_forward.1} parent=67 // pred_check_branch
          %600 = sbr.rel (%p598) target = $region100
        $region99: #{gnn_block_check_forward.1} parent=67 // pred_region
          %601 = dma.done [#allocation17], 16
        $region100: #{gnn_block_check_forward.1} parent=67 // pred_fallthru
          _
        // Predicated region
        $region101: #{gnn_block_check_forward.1} parent=67 // pred_check
          %p602 = pneg %p277
        $region102: #{gnn_block_check_forward.1} parent=67 // pred_check_branch
          %604 = sbr.rel (%p602) target = $region104
        $region103: #{gnn_block_check_forward.1} parent=67 // pred_region
          %605 = dma.done [#allocation17], 1024
        $region104: #{gnn_block_check_forward.1} parent=67 // pred_fallthru
          _
        // Predicated region
        $region105: #{gnn_block_check_forward.1} parent=67 // pred_check
          %p606 = pneg %p298
        $region106: #{gnn_block_check_forward.1} parent=67 // pred_check_branch
          %608 = sbr.rel (%p606) target = $region108
        $region107: #{gnn_block_check_forward.1} parent=67 // pred_region
          %609 = dma.done [#allocation20], 1024
        $region108: #{gnn_block_check_forward.1} parent=67 // pred_fallthru
          _
        // Predicated region
        $region109: #{gnn_block_check_forward.1} parent=67 // pred_check
          %p610 = pneg %p319
        $region110: #{gnn_block_check_forward.1} parent=67 // pred_check_branch
          %612 = sbr.rel (%p610) target = $region112
        $region111: #{gnn_block_check_forward.1} parent=67 // pred_region
          %613 = dma.done [#allocation20], 16
        $region112: #{gnn_block_check_forward.1} parent=67 // pred_fallthru
          _
        %s614 = sand.u32 %s63, 1
        %s615 = scalar_lea.sflag [#allocation5], %s614
        %s616 = sand.u32 %s63, 1
        %s617 = smul.addr %s616, 128
        %s618 = scalar_lea.vmem [#allocation4], %s617
        %p619 = pneg %p76
        %p620 = pneg %p73
        %s621 = sand.u32 %s43, 1
        %s622 = scalar_lea.sflag [#allocation8], %s621
        %s623 = sand.u32 %s91, 1
        %s624 = smul.addr %s623, 16
        %s625 = scalar_lea.vmem [#allocation7], %s624
        %p626 = pneg %p104
        %p627 = pneg %p101
        %p628 = pneg %p130
        %p629 = pneg %p127
        %p630 = pneg %p151
        %p631 = pneg %p148
        %p632 = pneg %p172
        %p633 = pneg %p169
        %p634 = pneg %p193
        %p635 = pneg %p190
        %p636 = pneg %p214
        %p637 = pneg %p211
        %p638 = pneg %p235
        %p639 = pneg %p232
        %p640 = pneg %p256
        %p641 = pneg %p253
        %p642 = pneg %p277
        %p643 = pneg %p274
        %p644 = pneg %p298
        %p645 = pneg %p295
        %p646 = pneg %p319
        %p647 = pneg %p316
        %p648 = pneg %p347
        %p649 = pneg %p344
        %s650 = sand.u32 %s334, 1
        %s651 = scalar_lea.sflag [#allocation6], %s650
        %s652 = sand.u32 %s334, 1
        %s653 = smul.addr %s652, 16
        %s654 = scalar_lea.vmem [#allocation22], %s653
        %p655 = pneg %p375
        %p656 = pneg %p372
        %s657 = sand.u32 %s362, 1
        %s658 = scalar_lea.sflag [#allocation24], %s657
        %s659 = sand.u32 %s362, 1
        %s660 = smul.addr %s659, 8
        %s661 = scalar_lea.vmem [#allocation23], %s660
        %s662 = smul.u32 2, %s48
        %s663 = smul.u32 2, %s48
        %s664 = smul.u32 2, %s48
        %s665 = smul.u32 2, %s48
        %v667 = vld [vmem:[%s564] sm:$0xff]
        %v668 = vld [vmem:[%s564 + $0x8] sm:$0xff]
        %v669 = vld [vmem:[%s564 + $0x10] sm:$0xff]
        %v670 = vld [vmem:[%s564 + $0x18] sm:$0xff]
        %v671 = vld [vmem:[%s564 + $0x20] sm:$0xff]
        %v672 = vld [vmem:[%s564 + $0x28] sm:$0xff]
        %v673 = vld [vmem:[%s564 + $0x30] sm:$0xff]
        %v674 = vld [vmem:[%s564 + $0x38] sm:$0xff]
        %v675 = vld [vmem:[%s564 + $0x40] sm:$0xff]
        %v676 = vld [vmem:[%s564 + $0x48] sm:$0xff]
        %v677 = vld [vmem:[%s564 + $0x50] sm:$0xff]
        %v678 = vld [vmem:[%s564 + $0x58] sm:$0xff]
        %v679 = vld [vmem:[%s564 + $0x60] sm:$0xff]
        %v680 = vld [vmem:[%s564 + $0x68] sm:$0xff]
        %v681 = vld [vmem:[%s564 + $0x70] sm:$0xff]
        %v682 = vld [vmem:[%s564 + $0x78] sm:$0xff]
        %v683 = vld [vmem:[%s573] sm:$0xff]
        %v684 = vld [vmem:[%s573 + $0x8] sm:$0xff]
        %v685 = vld [vmem:[#allocation9] sm:$0xff]
        %v686 = vld [vmem:[#allocation9 + $0x8] sm:$0xff]
        %p687 = scmp.eq.s32.totalorder %s48, 0
        // Predicated region
        $region113: #{gnn_block_check_forward.1} parent=67 // pred_check
          %p688 = pneg %p687
        $region114: #{gnn_block_check_forward.1} parent=67 // pred_check_branch
          %690 = sbr.rel (%p688) target = $region116
        $region115: #{gnn_block_check_forward.1} parent=67 // pred_region
          %v691 = vpack.c.bf16 %v668, %v667
          %v692 = vpack.c.bf16 %v670, %v669
          %v693 = vpack.c.bf16 %v672, %v671
          %v694 = vpack.c.bf16 %v674, %v673
          %v695 = vpack.c.bf16 %v676, %v675
          %v696 = vpack.c.bf16 %v678, %v677
          %v697 = vpack.c.bf16 %v680, %v679
          %v698 = vpack.c.bf16 %v682, %v681
          %v699 = vld [vmem:[#allocation13] sm:$0xf]
          %v700 = vld [vmem:[#allocation13 + $0x4] sm:$0xf]
          %v701 = vld [vmem:[#allocation13 + $0x8] sm:$0xf]
          %v702 = vld [vmem:[#allocation13 + $0xc] sm:$0xf]
          %v703 = vld [vmem:[#allocation13 + $0x10] sm:$0xf]
          %v704 = vld [vmem:[#allocation13 + $0x14] sm:$0xf]
          %v705 = vld [vmem:[#allocation13 + $0x18] sm:$0xf]
          %v706 = vld [vmem:[#allocation13 + $0x1c] sm:$0xf]
          %v707 = vld [vmem:[#allocation13 + $0x20] sm:$0xf]
          %v708 = vld [vmem:[#allocation13 + $0x24] sm:$0xf]
          %v709 = vld [vmem:[#allocation13 + $0x28] sm:$0xf]
          %v710 = vld [vmem:[#allocation13 + $0x2c] sm:$0xf]
          %v711 = vld [vmem:[#allocation13 + $0x30] sm:$0xf]
          %v712 = vld [vmem:[#allocation13 + $0x34] sm:$0xf]
          %v713 = vld [vmem:[#allocation13 + $0x38] sm:$0xf]
          %v714 = vld [vmem:[#allocation13 + $0x3c] sm:$0xf]
          %v731 = vunpack.c.l.b16 %v699
          %v732 = vunpack.c.l.b16 %v700
          %v733 = vunpack.c.l.b16 %v701
          %v734 = vunpack.c.l.b16 %v702
          %v735 = vunpack.c.l.b16 %v703
          %v736 = vunpack.c.l.b16 %v704
          %v737 = vunpack.c.l.b16 %v705
          %v738 = vunpack.c.l.b16 %v706
          %v739 = vunpack.c.l.b16 %v707
          %v740 = vunpack.c.l.b16 %v708
          %v741 = vunpack.c.l.b16 %v709
          %v742 = vunpack.c.l.b16 %v710
          %v743 = vunpack.c.l.b16 %v711
          %v744 = vunpack.c.l.b16 %v712
          %v745 = vunpack.c.l.b16 %v713
          %v746 = vunpack.c.l.b16 %v714
          %v747 = vpack.c.b16 %v732, %v731
          %v748 = vpack.c.b16 %v734, %v733
          %v749 = vpack.c.b16 %v736, %v735
          %v750 = vpack.c.b16 %v738, %v737
          %v751 = vpack.c.b16 %v740, %v739
          %v752 = vpack.c.b16 %v742, %v741
          %v753 = vpack.c.b16 %v744, %v743
          %v754 = vpack.c.b16 %v746, %v745
          %763 = vmatprep.subr.bf16.mxu0 0
          %764 = vmatpush1.bf16.msra.mxu0 %v747
          %765 = vmatprep.subr.bf16.mxu0 0
          %766 = vmatpush1.bf16.msra.mxu0 %v748
          %767 = vmatprep.subr.bf16.mxu0 0
          %768 = vmatpush1.bf16.msra.mxu0 %v749
          %769 = vmatprep.subr.bf16.mxu0 0
          %770 = vmatpush1.bf16.msra.mxu0 %v750
          %771 = vmatprep.subr.bf16.mxu0 0
          %772 = vmatpush1.bf16.msra.mxu0 %v751
          %773 = vmatprep.subr.bf16.mxu0 0
          %774 = vmatpush1.bf16.msra.mxu0 %v752
          %775 = vmatprep.subr.bf16.mxu0 0
          %776 = vmatpush1.bf16.msra.mxu0 %v753
          %777 = vmatprep.subr.bf16.mxu0 0
          %778 = vmatpush1.bf16.msra.mxu0 %v754
          %779 = vmatprep.subr.bf16.mxu0 0
          %780 = vmatpush1.bf16.msra.mxu0 0
          %781 = vmatprep.subr.bf16.mxu0 0
          %782 = vmatpush1.bf16.msra.mxu0 0
          %783 = vmatprep.subr.bf16.mxu0 0
          %784 = vmatpush1.bf16.msra.mxu0 0
          %785 = vmatprep.subr.bf16.mxu0 0
          %786 = vmatpush1.bf16.msra.mxu0 0
          %787 = vmatprep.subr.bf16.mxu0 0
          %788 = vmatpush1.bf16.msra.mxu0 0
          %789 = vmatprep.subr.bf16.mxu0 0
          %790 = vmatpush1.bf16.msra.mxu0 0
          %791 = vmatprep.subr.bf16.mxu0 0
          %792 = vmatpush1.bf16.msra.mxu0 0
          %793 = vmatprep.subr.bf16.mxu0 0
          %794 = vmatpush1.bf16.msra.mxu0 0
          %795 = vmatprep.mubr.bf16.mxu0 0
          %796 = vmatmul.mubr.bf16.gmra.mrb[0].mxu0 %v691
          %v797 = vpop.f32.mrb[0].mxu0
          %v798 = vadd.f32 0.0, %v797
          %v799 = vpop.f32.mrb[0].mxu0
          %v800 = vpop.f32.mrb[0].mxu0
          %v801 = vadd.f32 0.0, %v800
          %v802 = vpop.f32.mrb[0].mxu0
          %803 = vmatprep.mubr.bf16.mxu0 0
          %804 = vmatmul.mubr.bf16.gmra.mrb[0].mxu0 %v692
          %v805 = vpop.f32.mrb[0].mxu0
          %v806 = vadd.f32 0.0, %v805
          %v807 = vpop.f32.mrb[0].mxu0
          %v808 = vpop.f32.mrb[0].mxu0
          %v809 = vadd.f32 0.0, %v808
          %v810 = vpop.f32.mrb[0].mxu0
          %811 = vmatprep.mubr.bf16.mxu0 0
          %812 = vmatmul.mubr.bf16.gmra.mrb[0].mxu0 %v693
          %v813 = vpop.f32.mrb[0].mxu0
          %v814 = vadd.f32 0.0, %v813
          %v815 = vpop.f32.mrb[0].mxu0
          %v816 = vpop.f32.mrb[0].mxu0
          %v817 = vadd.f32 0.0, %v816
          %v818 = vpop.f32.mrb[0].mxu0
          %819 = vmatprep.mubr.bf16.mxu0 0
          %820 = vmatmul.mubr.bf16.gmra.mrb[0].mxu0 %v694
          %v821 = vpop.f32.mrb[0].mxu0
          %v822 = vadd.f32 0.0, %v821
          %v823 = vpop.f32.mrb[0].mxu0
          %v824 = vpop.f32.mrb[0].mxu0
          %v825 = vadd.f32 0.0, %v824
          %v826 = vpop.f32.mrb[0].mxu0
          %827 = vmatprep.mubr.bf16.mxu0 0
          %828 = vmatmul.mubr.bf16.gmra.mrb[0].mxu0 %v695
          %v829 = vpop.f32.mrb[0].mxu0
          %v830 = vadd.f32 0.0, %v829
          %v831 = vpop.f32.mrb[0].mxu0
          %v832 = vpop.f32.mrb[0].mxu0
          %v833 = vadd.f32 0.0, %v832
          %v834 = vpop.f32.mrb[0].mxu0
          %835 = vmatprep.mubr.bf16.mxu0 0
          %836 = vmatmul.mubr.bf16.gmra.mrb[0].mxu0 %v696
          %v837 = vpop.f32.mrb[0].mxu0
          %v838 = vadd.f32 0.0, %v837
          %v839 = vpop.f32.mrb[0].mxu0
          %v840 = vpop.f32.mrb[0].mxu0
          %v841 = vadd.f32 0.0, %v840
          %v842 = vpop.f32.mrb[0].mxu0
          %843 = vmatprep.mubr.bf16.mxu0 0
          %844 = vmatmul.mubr.bf16.gmra.mrb[0].mxu0 %v697
          %v845 = vpop.f32.mrb[0].mxu0
          %v846 = vadd.f32 0.0, %v845
          %v847 = vpop.f32.mrb[0].mxu0
          %v848 = vpop.f32.mrb[0].mxu0
          %v849 = vadd.f32 0.0, %v848
          %v850 = vpop.f32.mrb[0].mxu0
          %851 = vmatprep.mubr.bf16.mxu0 0
          %852 = vmatmul.mubr.bf16.gmra.mrb[0].mxu0 %v698
          %v853 = vpop.f32.mrb[0].mxu0
          %v854 = vadd.f32 0.0, %v853
          %v855 = vpop.f32.mrb[0].mxu0
          %v856 = vpop.f32.mrb[0].mxu0
          %v857 = vadd.f32 0.0, %v856
          %v858 = vpop.f32.mrb[0].mxu0
          %859 = vdwg.mxu0
          %v860 = vpack.c.bf16 %v801, %v798
          %v861 = vpack.c.bf16 %v809, %v806
          %v862 = vpack.c.bf16 %v817, %v814
          %v863 = vpack.c.bf16 %v825, %v822
          %v864 = vpack.c.bf16 %v833, %v830
          %v865 = vpack.c.bf16 %v841, %v838
          %v866 = vpack.c.bf16 %v849, %v846
          %v867 = vpack.c.bf16 %v857, %v854
          %868 = vst [vmem:[#allocation2] sm:$0xff] %v860
          %869 = vst [vmem:[#allocation2 + $0x8] sm:$0xff] %v861
          %870 = vst [vmem:[#allocation2 + $0x10] sm:$0xff] %v862
          %871 = vst [vmem:[#allocation2 + $0x18] sm:$0xff] %v863
          %872 = vst [vmem:[#allocation2 + $0x20] sm:$0xff] %v864
          %873 = vst [vmem:[#allocation2 + $0x28] sm:$0xff] %v865
          %874 = vst [vmem:[#allocation2 + $0x30] sm:$0xff] %v866
          %875 = vst [vmem:[#allocation2 + $0x38] sm:$0xff] %v867
        $region116: #{gnn_block_check_forward.1} parent=67 // pred_fallthru
          _
        %v876 = vld [vmem:[#allocation10] sm:$0x1]
        %v878 = vlaneseq
        %v879 = vshrl.u32 %v878, 7
        %v880 = vsub.s32 0, %v879
        %v881 = vrot.slane %v876, %v880
        %v883 = vmul.f32 %v683, %v881
        %v884 = vmul.f32 %v684, %v881
        %885 = vadd.xlane.f32.xlu0 %v883
        %v886 = vpop.xlane.xlu0 %885
        %887 = vadd.xlane.f32.xlu0 %v884
        %v888 = vpop.xlane.xlu0 %887
        %v889 = vld [vmem:[#allocation12] sm:$0x1]
        %890 = vmatprep.subr.mxu0 0.0
        %891 = vmatpush1.xpose.msra.mxu0 %v667
        %892 = vmatprep.subr.mxu0 0.0
        %893 = vmatpush1.xpose.msra.mxu0 %v668
        %894 = vmatprep.subr.mxu0 0.0
        %895 = vmatpush1.xpose.msra.mxu0 %v669
        %896 = vmatprep.subr.mxu0 0.0
        %897 = vmatpush1.xpose.msra.mxu0 %v670
        %898 = vmatprep.subr.mxu0 0.0
        %899 = vmatpush1.xpose.msra.mxu0 %v671
        %900 = vmatprep.subr.mxu0 0.0
        %901 = vmatpush1.xpose.msra.mxu0 %v672
        %902 = vmatprep.subr.mxu0 0.0
        %903 = vmatpush1.xpose.msra.mxu0 %v673
        %904 = vmatprep.subr.mxu0 0.0
        %905 = vmatpush1.xpose.msra.mxu0 %v674
        %906 = vmatprep.subr.mxu0 0.0
        %907 = vmatpush1.xpose.msra.mxu0 %v675
        %908 = vmatprep.subr.mxu0 0.0
        %909 = vmatpush1.xpose.msra.mxu0 %v676
        %910 = vmatprep.subr.mxu0 0.0
        %911 = vmatpush1.xpose.msra.mxu0 %v677
        %912 = vmatprep.subr.mxu0 0.0
        %913 = vmatpush1.xpose.msra.mxu0 %v678
        %914 = vmatprep.subr.mxu0 0.0
        %915 = vmatpush1.xpose.msra.mxu0 %v679
        %916 = vmatprep.subr.mxu0 0.0
        %917 = vmatpush1.xpose.msra.mxu0 %v680
        %918 = vmatprep.subr.mxu0 0.0
        %919 = vmatpush1.xpose.msra.mxu0 %v681
        %920 = vmatprep.subr.mxu0 0.0
        %921 = vmatpush1.xpose.msra.mxu0 %v682
        %922 = vmatprep.subr.mxu0 0.0
        %923 = vmatpush1.xpose.msra.mxu0 0.0
        %924 = vmatprep.subr.mxu0 0.0
        %925 = vmatpush1.xpose.msra.mxu0 0.0
        %926 = vmatprep.subr.mxu0 0.0
        %927 = vmatpush1.xpose.msra.mxu0 0.0
        %928 = vmatprep.subr.mxu0 0.0
        %929 = vmatpush1.xpose.msra.mxu0 0.0
        %930 = vmatprep.subr.mxu0 0.0
        %931 = vmatpush1.xpose.msra.mxu0 0.0
        %932 = vmatprep.subr.mxu0 0.0
        %933 = vmatpush1.xpose.msra.mxu0 0.0
        %934 = vmatprep.subr.mxu0 0.0
        %935 = vmatpush1.xpose.msra.mxu0 0.0
        %936 = vmatprep.subr.mxu0 0.0
        %937 = vmatpush1.xpose.msra.mxu0 0.0
        %938 = vmatprep.subr.mxu0 0.0
        %939 = vmatpush1.xpose.msra.mxu0 0.0
        %940 = vmatprep.subr.mxu0 0.0
        %941 = vmatpush1.xpose.msra.mxu0 0.0
        %942 = vmatprep.subr.mxu0 0.0
        %943 = vmatpush1.xpose.msra.mxu0 0.0
        %944 = vmatprep.subr.mxu0 0.0
        %945 = vmatpush1.xpose.msra.mxu0 0.0
        %946 = vmatprep.subr.mxu0 0.0
        %947 = vmatpush1.xpose.msra.mxu0 0.0
        %948 = vmatprep.subr.mxu0 0.0
        %949 = vmatpush1.xpose.msra.mxu0 0.0
        %950 = vmatprep.subr.mxu0 0.0
        %951 = vmatpush1.xpose.msra.mxu0 0.0
        %952 = vmatprep.subr.mxu0 0.0
        %953 = vmatpush1.xpose.msra.mxu0 0.0
        %954 = vmatprep.mubr.f32.mxu0 0.0
        %955 = vmatmul.mubr.f32.gmra.mrb[0].mxu0 %v889
        %v956 = vpop.f32.mrb[0].mxu0
        %v957 = vadd.f32 0.0, %v956
        %v958 = vpop.f32.mrb[0].mxu0
        %959 = vdwg.mxu0
        %v960 = vlaneseq
        %v961 = vshrl.u32 %v960, 7
        %v962 = vsub.s32 0, %v961
        %v963 = vrot.slane %v957, %v962
        %v964 = vadd.f32 %v886, %v963
        %v965 = vadd.f32 %v888, %v963
        %v966 = vld [vmem:[#allocation3] sm:$0x1]
        %v968 = vlaneseq
        %v969 = vshrl.u32 %v968, 7
        %v970 = vsub.s32 0, %v969
        %v971 = vrot.slane %v966, %v970
        %972 = vset.pattern.permute.xlu0 0
        %973 = vperm.xlu0 %972, %v971
        %v974 = vpop.permute.xlu0 %973
        %v976 = vadd.f32 %v964, %v974
        %v977 = vadd.f32 %v965, %v974
        %v978 = vmul.f32 %v976, 0.2
        %v979 = vmul.f32 %v977, 0.2
        %v980 = vmax.f32 %v976, %v978
        %v981 = vmax.f32 %v977, %v979
        %vm982 = vcmp.gt.f32.partialorder %v685, 0.0
        %vm983 = vcmp.gt.f32.partialorder %v686, 0.0
        %v984 = vsel %vm982, %v980, -1e+30
        %v985 = vsel %vm983, %v981, -1e+30
        %986 = vmax.xlane.f32.xlu0 %v984
        %v987 = vpop.xlane.xlu0 %986
        %988 = vmax.xlane.f32.xlu0 %v985
        %v989 = vpop.xlane.xlu0 %988
        %v990 = vsub.f32 %v984, %v987
        %v991 = vsub.f32 %v985, %v989
        %v992 = vmul.f32 %v990, 1.442695
        %v993 = vpow.pop %v992
        %v994 = vmul.f32 %v991, 1.442695
        %v995 = vpow.pop %v994
        %v996 = vmul.f32 %v993, %v685
        %v997 = vmul.f32 %v995, %v686
        %998 = vadd.xlane.f32.xlu0 %v996
        %v999 = vpop.xlane.xlu0 %998
        %1000 = vadd.xlane.f32.xlu0 %v997
        %v1001 = vpop.xlane.xlu0 %1000
        %v1002 = vadd.f32 %v999, 1e-09
        %v1003 = vadd.f32 %v1001, 1e-09
        %v1004 = vrcp.pop %v1002
        %v1005 = vrcp.pop %v1003
        %v1006 = vmul.f32 %v996, %v1004
        %v1007 = vmul.f32 %v997, %v1005
        %v1008 = vpack.c.bf16 %v1007, %v1006
        %v1010 = vunpack.c.l.b16 %v1008
        %v1011 = vunpack.c.h.b16 %v1008
        %v1012 = vpack.c.b16 %v1010, %v1010
        %v1013 = vpack.c.b16 %v1011, %v1011
        %1016 = vst [vmem:[%s661] sm:$0xf] %v1012
        %1017 = vst [vmem:[%s661 + $0x4] sm:$0xf] %v1013
        %v1018 = vpack.c.bf16 %v684, %v683
        %v1019 = vld [vmem:[#allocation15] sm:$0xf]
        %v1020 = vld [vmem:[#allocation15 + $0x4] sm:$0xf]
        %v1021 = vld [vmem:[#allocation15 + $0x8] sm:$0xf]
        %v1022 = vld [vmem:[#allocation15 + $0xc] sm:$0xf]
        %v1023 = vld [vmem:[#allocation15 + $0x10] sm:$0xf]
        %v1024 = vld [vmem:[#allocation15 + $0x14] sm:$0xf]
        %v1025 = vld [vmem:[#allocation15 + $0x18] sm:$0xf]
        %v1026 = vld [vmem:[#allocation15 + $0x1c] sm:$0xf]
        %v1027 = vld [vmem:[#allocation15 + $0x20] sm:$0xf]
        %v1028 = vld [vmem:[#allocation15 + $0x24] sm:$0xf]
        %v1029 = vld [vmem:[#allocation15 + $0x28] sm:$0xf]
        %v1030 = vld [vmem:[#allocation15 + $0x2c] sm:$0xf]
        %v1031 = vld [vmem:[#allocation15 + $0x30] sm:$0xf]
        %v1032 = vld [vmem:[#allocation15 + $0x34] sm:$0xf]
        %v1033 = vld [vmem:[#allocation15 + $0x38] sm:$0xf]
        %v1034 = vld [vmem:[#allocation15 + $0x3c] sm:$0xf]
        %v1035 = vld [vmem:[#allocation16] sm:$0x1]
        %v1037 = vlaneseq
        %v1038 = vshrl.u32 %v1037, 7
        %v1039 = vsub.s32 0, %v1038
        %v1040 = vrot.slane %v1035, %v1039
        %v1058 = vunpack.c.l.b16 %v1019
        %v1059 = vunpack.c.l.b16 %v1020
        %v1060 = vunpack.c.l.b16 %v1021
        %v1061 = vunpack.c.l.b16 %v1022
        %v1062 = vunpack.c.l.b16 %v1023
        %v1063 = vunpack.c.l.b16 %v1024
        %v1064 = vunpack.c.l.b16 %v1025
        %v1065 = vunpack.c.l.b16 %v1026
        %v1066 = vunpack.c.l.b16 %v1027
        %v1067 = vunpack.c.l.b16 %v1028
        %v1068 = vunpack.c.l.b16 %v1029
        %v1069 = vunpack.c.l.b16 %v1030
        %v1070 = vunpack.c.l.b16 %v1031
        %v1071 = vunpack.c.l.b16 %v1032
        %v1072 = vunpack.c.l.b16 %v1033
        %v1073 = vunpack.c.l.b16 %v1034
        %v1074 = vpack.c.b16 %v1059, %v1058
        %v1075 = vpack.c.b16 %v1061, %v1060
        %v1076 = vpack.c.b16 %v1063, %v1062
        %v1077 = vpack.c.b16 %v1065, %v1064
        %v1078 = vpack.c.b16 %v1067, %v1066
        %v1079 = vpack.c.b16 %v1069, %v1068
        %v1080 = vpack.c.b16 %v1071, %v1070
        %v1081 = vpack.c.b16 %v1073, %v1072
        %1090 = vmatprep.subr.bf16.mxu0 0
        %1091 = vmatpush1.bf16.msra.mxu0 %v1074
        %1092 = vmatprep.subr.bf16.mxu0 0
        %1093 = vmatpush1.bf16.msra.mxu0 %v1075
        %1094 = vmatprep.subr.bf16.mxu0 0
        %1095 = vmatpush1.bf16.msra.mxu0 %v1076
        %1096 = vmatprep.subr.bf16.mxu0 0
        %1097 = vmatpush1.bf16.msra.mxu0 %v1077
        %1098 = vmatprep.subr.bf16.mxu0 0
        %1099 = vmatpush1.bf16.msra.mxu0 %v1078
        %1100 = vmatprep.subr.bf16.mxu0 0
        %1101 = vmatpush1.bf16.msra.mxu0 %v1079
        %1102 = vmatprep.subr.bf16.mxu0 0
        %1103 = vmatpush1.bf16.msra.mxu0 %v1080
        %1104 = vmatprep.subr.bf16.mxu0 0
        %1105 = vmatpush1.bf16.msra.mxu0 %v1081
        %1106 = vmatprep.subr.bf16.mxu0 0
        %1107 = vmatpush1.bf16.msra.mxu0 0
        %1108 = vmatprep.subr.bf16.mxu0 0
        %1109 = vmatpush1.bf16.msra.mxu0 0
        %1110 = vmatprep.subr.bf16.mxu0 0
        %1111 = vmatpush1.bf16.msra.mxu0 0
        %1112 = vmatprep.subr.bf16.mxu0 0
        %1113 = vmatpush1.bf16.msra.mxu0 0
        %1114 = vmatprep.subr.bf16.mxu0 0
        %1115 = vmatpush1.bf16.msra.mxu0 0
        %1116 = vmatprep.subr.bf16.mxu0 0
        %1117 = vmatpush1.bf16.msra.mxu0 0
        %1118 = vmatprep.subr.bf16.mxu0 0
        %1119 = vmatpush1.bf16.msra.mxu0 0
        %1120 = vmatprep.subr.bf16.mxu0 0
        %1121 = vmatpush1.bf16.msra.mxu0 0
        %1122 = vmatprep.mubr.bf16.mxu0 0
        %1123 = vmatmul.mubr.bf16.gmra.mrb[0].mxu0 %v1018
        %v1124 = vpop.f32.mrb[0].mxu0
        %v1125 = vadd.f32 %v1040, %v1124
        %v1126 = vpop.f32.mrb[0].mxu0
        %v1127 = vpop.f32.mrb[0].mxu0
        %v1128 = vadd.f32 %v1040, %v1127
        %v1129 = vpop.f32.mrb[0].mxu0
        %1130 = vdwg.mxu0
        %v1131 = vmul.f32 %v999, %v1004
        %v1132 = vmul.f32 %v1001, %v1005
        %v1133 = vld [vmem:[#allocation2] sm:$0xff]
        %v1134 = vld [vmem:[#allocation2 + $0x8] sm:$0xff]
        %v1135 = vld [vmem:[#allocation2 + $0x10] sm:$0xff]
        %v1136 = vld [vmem:[#allocation2 + $0x18] sm:$0xff]
        %v1137 = vld [vmem:[#allocation2 + $0x20] sm:$0xff]
        %v1138 = vld [vmem:[#allocation2 + $0x28] sm:$0xff]
        %v1139 = vld [vmem:[#allocation2 + $0x30] sm:$0xff]
        %v1140 = vld [vmem:[#allocation2 + $0x38] sm:$0xff]
        %v1141 = vmul.f32 %v1131, %v1125
        %v1142 = vmul.f32 %v1132, %v1128
        %1143 = vmatprep.subr.bf16.mxu0 0
        %1144 = vmatpush1.bf16.msra.mxu0 %v1133
        %1145 = vmatprep.subr.bf16.mxu0 0
        %1146 = vmatpush1.bf16.msra.mxu0 %v1134
        %1147 = vmatprep.subr.bf16.mxu0 0
        %1148 = vmatpush1.bf16.msra.mxu0 %v1135
        %1149 = vmatprep.subr.bf16.mxu0 0
        %1150 = vmatpush1.bf16.msra.mxu0 %v1136
        %1151 = vmatprep.subr.bf16.mxu0 0
        %1152 = vmatpush1.bf16.msra.mxu0 %v1137
        %1153 = vmatprep.subr.bf16.mxu0 0
        %1154 = vmatpush1.bf16.msra.mxu0 %v1138
        %1155 = vmatprep.subr.bf16.mxu0 0
        %1156 = vmatpush1.bf16.msra.mxu0 %v1139
        %1157 = vmatprep.subr.bf16.mxu0 0
        %1158 = vmatpush1.bf16.msra.mxu0 %v1140
        %1159 = vmatprep.subr.bf16.mxu0 0
        %1160 = vmatpush1.bf16.msra.mxu0 0
        %1161 = vmatprep.subr.bf16.mxu0 0
        %1162 = vmatpush1.bf16.msra.mxu0 0
        %1163 = vmatprep.subr.bf16.mxu0 0
        %1164 = vmatpush1.bf16.msra.mxu0 0
        %1165 = vmatprep.subr.bf16.mxu0 0
        %1166 = vmatpush1.bf16.msra.mxu0 0
        %1167 = vmatprep.subr.bf16.mxu0 0
        %1168 = vmatpush1.bf16.msra.mxu0 0
        %1169 = vmatprep.subr.bf16.mxu0 0
        %1170 = vmatpush1.bf16.msra.mxu0 0
        %1171 = vmatprep.subr.bf16.mxu0 0
        %1172 = vmatpush1.bf16.msra.mxu0 0
        %1173 = vmatprep.subr.bf16.mxu0 0
        %1174 = vmatpush1.bf16.msra.mxu0 0
        %1175 = vmatprep.mubr.bf16.mxu0 0
        %1176 = vmatmul.mubr.bf16.gmra.mrb[0].mxu0 %v1008
        %v1177 = vpop.f32.mrb[0].mxu0
        %v1178 = vadd.f32 %v1141, %v1177
        %v1179 = vpop.f32.mrb[0].mxu0
        %v1180 = vpop.f32.mrb[0].mxu0
        %v1181 = vadd.f32 %v1142, %v1180
        %v1182 = vpop.f32.mrb[0].mxu0
        %1183 = vdwg.mxu0
        %v1184 = vld [vmem:[#allocation18] sm:$0xf]
        %v1185 = vld [vmem:[#allocation18 + $0x4] sm:$0xf]
        %v1186 = vld [vmem:[#allocation18 + $0x8] sm:$0xf]
        %v1187 = vld [vmem:[#allocation18 + $0xc] sm:$0xf]
        %v1188 = vld [vmem:[#allocation18 + $0x10] sm:$0xf]
        %v1189 = vld [vmem:[#allocation18 + $0x14] sm:$0xf]
        %v1190 = vld [vmem:[#allocation18 + $0x18] sm:$0xf]
        %v1191 = vld [vmem:[#allocation18 + $0x1c] sm:$0xf]
        %v1192 = vld [vmem:[#allocation18 + $0x20] sm:$0xf]
        %v1193 = vld [vmem:[#allocation18 + $0x24] sm:$0xf]
        %v1194 = vld [vmem:[#allocation18 + $0x28] sm:$0xf]
        %v1195 = vld [vmem:[#allocation18 + $0x2c] sm:$0xf]
        %v1196 = vld [vmem:[#allocation18 + $0x30] sm:$0xf]
        %v1197 = vld [vmem:[#allocation18 + $0x34] sm:$0xf]
        %v1198 = vld [vmem:[#allocation18 + $0x38] sm:$0xf]
        %v1199 = vld [vmem:[#allocation18 + $0x3c] sm:$0xf]
        %v1200 = vpack.c.bf16 %v1181, %v1178
        %v1201 = vld [vmem:[#allocation19] sm:$0xf]
        %v1202 = vld [vmem:[#allocation19 + $0x4] sm:$0xf]
        %v1203 = vld [vmem:[#allocation19 + $0x8] sm:$0xf]
        %v1204 = vld [vmem:[#allocation19 + $0xc] sm:$0xf]
        %v1205 = vld [vmem:[#allocation19 + $0x10] sm:$0xf]
        %v1206 = vld [vmem:[#allocation19 + $0x14] sm:$0xf]
        %v1207 = vld [vmem:[#allocation19 + $0x18] sm:$0xf]
        %v1208 = vld [vmem:[#allocation19 + $0x1c] sm:$0xf]
        %v1209 = vld [vmem:[#allocation19 + $0x20] sm:$0xf]
        %v1210 = vld [vmem:[#allocation19 + $0x24] sm:$0xf]
        %v1211 = vld [vmem:[#allocation19 + $0x28] sm:$0xf]
        %v1212 = vld [vmem:[#allocation19 + $0x2c] sm:$0xf]
        %v1213 = vld [vmem:[#allocation19 + $0x30] sm:$0xf]
        %v1214 = vld [vmem:[#allocation19 + $0x34] sm:$0xf]
        %v1215 = vld [vmem:[#allocation19 + $0x38] sm:$0xf]
        %v1216 = vld [vmem:[#allocation19 + $0x3c] sm:$0xf]
        %v1233 = vunpack.c.l.b16 %v1201
        %v1234 = vunpack.c.l.b16 %v1202
        %v1235 = vunpack.c.l.b16 %v1203
        %v1236 = vunpack.c.l.b16 %v1204
        %v1237 = vunpack.c.l.b16 %v1205
        %v1238 = vunpack.c.l.b16 %v1206
        %v1239 = vunpack.c.l.b16 %v1207
        %v1240 = vunpack.c.l.b16 %v1208
        %v1241 = vunpack.c.l.b16 %v1209
        %v1242 = vunpack.c.l.b16 %v1210
        %v1243 = vunpack.c.l.b16 %v1211
        %v1244 = vunpack.c.l.b16 %v1212
        %v1245 = vunpack.c.l.b16 %v1213
        %v1246 = vunpack.c.l.b16 %v1214
        %v1247 = vunpack.c.l.b16 %v1215
        %v1248 = vunpack.c.l.b16 %v1216
        %v1249 = vpack.c.b16 %v1234, %v1233
        %v1250 = vpack.c.b16 %v1236, %v1235
        %v1251 = vpack.c.b16 %v1238, %v1237
        %v1252 = vpack.c.b16 %v1240, %v1239
        %v1253 = vpack.c.b16 %v1242, %v1241
        %v1254 = vpack.c.b16 %v1244, %v1243
        %v1255 = vpack.c.b16 %v1246, %v1245
        %v1256 = vpack.c.b16 %v1248, %v1247
        %1265 = vmatprep.subr.bf16.mxu0 0
        %1266 = vmatpush1.bf16.msra.mxu0 %v1249
        %1267 = vmatprep.subr.bf16.mxu0 0
        %1268 = vmatpush1.bf16.msra.mxu0 %v1250
        %1269 = vmatprep.subr.bf16.mxu0 0
        %1270 = vmatpush1.bf16.msra.mxu0 %v1251
        %1271 = vmatprep.subr.bf16.mxu0 0
        %1272 = vmatpush1.bf16.msra.mxu0 %v1252
        %1273 = vmatprep.subr.bf16.mxu0 0
        %1274 = vmatpush1.bf16.msra.mxu0 %v1253
        %1275 = vmatprep.subr.bf16.mxu0 0
        %1276 = vmatpush1.bf16.msra.mxu0 %v1254
        %1277 = vmatprep.subr.bf16.mxu0 0
        %1278 = vmatpush1.bf16.msra.mxu0 %v1255
        %1279 = vmatprep.subr.bf16.mxu0 0
        %1280 = vmatpush1.bf16.msra.mxu0 %v1256
        %1281 = vmatprep.subr.bf16.mxu0 0
        %1282 = vmatpush1.bf16.msra.mxu0 0
        %1283 = vmatprep.subr.bf16.mxu0 0
        %1284 = vmatpush1.bf16.msra.mxu0 0
        %1285 = vmatprep.subr.bf16.mxu0 0
        %1286 = vmatpush1.bf16.msra.mxu0 0
        %1287 = vmatprep.subr.bf16.mxu0 0
        %1288 = vmatpush1.bf16.msra.mxu0 0
        %1289 = vmatprep.subr.bf16.mxu0 0
        %1290 = vmatpush1.bf16.msra.mxu0 0
        %1291 = vmatprep.subr.bf16.mxu0 0
        %1292 = vmatpush1.bf16.msra.mxu0 0
        %1293 = vmatprep.subr.bf16.mxu0 0
        %1294 = vmatpush1.bf16.msra.mxu0 0
        %1295 = vmatprep.subr.bf16.mxu0 0
        %1296 = vmatpush1.bf16.msra.mxu0 0
        %1297 = vmatprep.mubr.bf16.mxu0 0
        %1298 = vmatmul.mubr.bf16.gmra.mrb[0].mxu0 %v1200
        %v1299 = vpop.f32.mrb[0].mxu0
        %v1300 = vadd.f32 0.0, %v1299
        %v1301 = vpop.f32.mrb[0].mxu0
        %v1302 = vpop.f32.mrb[0].mxu0
        %v1303 = vadd.f32 0.0, %v1302
        %v1304 = vpop.f32.mrb[0].mxu0
        %1305 = vdwg.mxu0
        %v1322 = vunpack.c.l.b16 %v1184
        %v1323 = vunpack.c.l.b16 %v1185
        %v1324 = vunpack.c.l.b16 %v1186
        %v1325 = vunpack.c.l.b16 %v1187
        %v1326 = vunpack.c.l.b16 %v1188
        %v1327 = vunpack.c.l.b16 %v1189
        %v1328 = vunpack.c.l.b16 %v1190
        %v1329 = vunpack.c.l.b16 %v1191
        %v1330 = vunpack.c.l.b16 %v1192
        %v1331 = vunpack.c.l.b16 %v1193
        %v1332 = vunpack.c.l.b16 %v1194
        %v1333 = vunpack.c.l.b16 %v1195
        %v1334 = vunpack.c.l.b16 %v1196
        %v1335 = vunpack.c.l.b16 %v1197
        %v1336 = vunpack.c.l.b16 %v1198
        %v1337 = vunpack.c.l.b16 %v1199
        %v1338 = vpack.c.b16 %v1323, %v1322
        %v1339 = vpack.c.b16 %v1325, %v1324
        %v1340 = vpack.c.b16 %v1327, %v1326
        %v1341 = vpack.c.b16 %v1329, %v1328
        %v1342 = vpack.c.b16 %v1331, %v1330
        %v1343 = vpack.c.b16 %v1333, %v1332
        %v1344 = vpack.c.b16 %v1335, %v1334
        %v1345 = vpack.c.b16 %v1337, %v1336
        %1354 = vmatprep.subr.bf16.mxu0 0
        %1355 = vmatpush1.bf16.msra.mxu0 %v1338
        %1356 = vmatprep.subr.bf16.mxu0 0
        %1357 = vmatpush1.bf16.msra.mxu0 %v1339
        %1358 = vmatprep.subr.bf16.mxu0 0
        %1359 = vmatpush1.bf16.msra.mxu0 %v1340
        %1360 = vmatprep.subr.bf16.mxu0 0
        %1361 = vmatpush1.bf16.msra.mxu0 %v1341
        %1362 = vmatprep.subr.bf16.mxu0 0
        %1363 = vmatpush1.bf16.msra.mxu0 %v1342
        %1364 = vmatprep.subr.bf16.mxu0 0
        %1365 = vmatpush1.bf16.msra.mxu0 %v1343
        %1366 = vmatprep.subr.bf16.mxu0 0
        %1367 = vmatpush1.bf16.msra.mxu0 %v1344
        %1368 = vmatprep.subr.bf16.mxu0 0
        %1369 = vmatpush1.bf16.msra.mxu0 %v1345
        %1370 = vmatprep.subr.bf16.mxu0 0
        %1371 = vmatpush1.bf16.msra.mxu0 0
        %1372 = vmatprep.subr.bf16.mxu0 0
        %1373 = vmatpush1.bf16.msra.mxu0 0
        %1374 = vmatprep.subr.bf16.mxu0 0
        %1375 = vmatpush1.bf16.msra.mxu0 0
        %1376 = vmatprep.subr.bf16.mxu0 0
        %1377 = vmatpush1.bf16.msra.mxu0 0
        %1378 = vmatprep.subr.bf16.mxu0 0
        %1379 = vmatpush1.bf16.msra.mxu0 0
        %1380 = vmatprep.subr.bf16.mxu0 0
        %1381 = vmatpush1.bf16.msra.mxu0 0
        %1382 = vmatprep.subr.bf16.mxu0 0
        %1383 = vmatpush1.bf16.msra.mxu0 0
        %1384 = vmatprep.subr.bf16.mxu0 0
        %1385 = vmatpush1.bf16.msra.mxu0 0
        %1386 = vmatprep.mubr.bf16.mxu0 0
        %1387 = vmatmul.mubr.bf16.gmra.mrb[0].mxu0 %v1018
        %v1388 = vpop.f32.mrb[0].mxu0
        %v1389 = vadd.f32 %v1300, %v1388
        %v1390 = vpop.f32.mrb[0].mxu0
        %v1391 = vpop.f32.mrb[0].mxu0
        %v1392 = vadd.f32 %v1303, %v1391
        %v1393 = vpop.f32.mrb[0].mxu0
        %1394 = vdwg.mxu0
        %v1395 = vld [vmem:[#allocation21] sm:$0x1]
        %v1397 = vlaneseq
        %v1398 = vshrl.u32 %v1397, 7
        %v1399 = vsub.s32 0, %v1398
        %v1400 = vrot.slane %v1395, %v1399
        %v1402 = vadd.f32 %v1389, %v1400
        %v1403 = vadd.f32 %v1392, %v1400
        %v1404 = vmax.f32 %v1402, 0.0
        %v1405 = vmax.f32 %v1403, 0.0
        %1406 = vst [vmem:[%s654] sm:$0xff] %v1404
        %1407 = vst [vmem:[%s654 + $0x8] sm:$0xff] %v1405
        %s1408 = sand.u32 %s334, 1
        %s1409 = scalar_lea.sflag [#allocation6], %s1408
        %s1410 = sand.u32 %s334, 1
        %s1411 = smul.addr %s1410, 16
        %s1412 = scalar_lea.vmem [#allocation22], %s1411
        %s1413 = sand.u32 %s362, 1
        %s1414 = scalar_lea.sflag [#allocation24], %s1413
        %s1415 = sand.u32 %s362, 1
        %s1416 = smul.addr %s1415, 8
        %s1417 = scalar_lea.vmem [#allocation23], %s1416
        // Predicated region
        $region117: #{gnn_block_check_forward.1} parent=67 // pred_check
          %p1418 = pneg %p344
        $region118: #{gnn_block_check_forward.1} parent=67 // pred_check_branch
          %1420 = sbr.rel (%p1418) target = $region120
        $region119: #{gnn_block_check_forward.1} parent=67 // pred_region
          %s1421 = smul.u32 2, %s48
          %s1423 = ssub.s32 256, 256
          %1424 = vsyncadd %s1409, %s1423
          %s1425 = smul.addr %s47, 2
          %s1426 = sadd.s32 %s1421, %s1425
          %s1427 = smul.addr %s1426, 128
          %s1428 = scalar_lea.hbm %s12, %s1427
          %s1429 = sshll.u32 %s1412, 4
          %s1430 = int_to_ptr.vmem [resolvable:$true] %s1429
          %1435 = dma.vmem_to_hbm [thread:$0]  %s1430, 256, %s1428, %s1409, 128, 128, 8
        $region120: #{gnn_block_check_forward.1} parent=67 // pred_fallthru
          _
        // Predicated region
        $region121: #{gnn_block_check_forward.1} parent=67 // pred_check
          %p1436 = pneg %p372
        $region122: #{gnn_block_check_forward.1} parent=67 // pred_check_branch
          %1438 = sbr.rel (%p1436) target = $region124
        $region123: #{gnn_block_check_forward.1} parent=67 // pred_region
          %s1439 = smul.u32 2, %s48
          %s1441 = ssub.s32 128, 128
          %1442 = vsyncadd %s1414, %s1441
          %s1443 = smul.addr %s47, 2
          %s1444 = sadd.s32 %s1439, %s1443
          %s1445 = smul.addr %s1444, 64
          %s1446 = scalar_lea.hbm %s13, %s1445
          %s1447 = sshll.u32 %s1417, 4
          %s1448 = int_to_ptr.vmem [resolvable:$true] %s1447
          %1453 = dma.vmem_to_hbm [thread:$0]  %s1448, 128, %s1446, %s1414, 64, 64, 4
        $region124: #{gnn_block_check_forward.1} parent=67 // pred_fallthru
          _
      $region68: #{gnn_block_check_forward.1} parent=5 // pred_fallthru
        _
      %p1454 = scmp.le.s32.totalorder 2, %s38
      // Predicated region
      $region125: #{gnn_block_check_forward.1} parent=5 // pred_check
        %p1455 = pneg %p1454
      $region126: #{gnn_block_check_forward.1} parent=5 // pred_check_branch
        %1457 = sbr.rel (%p1455) target = $region128
      $region127: #{gnn_block_check_forward.1} parent=5 // pred_region
        %s1458 = ssub.s32 %s38, 2
        // Predicated region
        $region129: #{gnn_block_check_forward.1} parent=127 // pred_check
          %p1459 = pneg %p350
        $region130: #{gnn_block_check_forward.1} parent=127 // pred_check_branch
          %1461 = sbr.rel (%p1459) target = $region132
        $region131: #{gnn_block_check_forward.1} parent=127 // pred_region
          %s1462 = sand.u32 %s335, 1
          %s1463 = scalar_lea.sflag [#allocation6], %s1462
          %s1464 = sand.u32 %s335, 1
          %s1465 = smul.addr %s1464, 16
          %s1466 = scalar_lea.vmem [#allocation22], %s1465
          %1467 = dma.done %s1463, 256
        $region132: #{gnn_block_check_forward.1} parent=127 // pred_fallthru
          _
        // Predicated region
        $region133: #{gnn_block_check_forward.1} parent=127 // pred_check
          %p1468 = pneg %p378
        $region134: #{gnn_block_check_forward.1} parent=127 // pred_check_branch
          %1470 = sbr.rel (%p1468) target = $region136
        $region135: #{gnn_block_check_forward.1} parent=127 // pred_region
          %s1471 = sand.u32 %s363, 1
          %s1472 = scalar_lea.sflag [#allocation24], %s1471
          %s1473 = sand.u32 %s363, 1
          %s1474 = smul.addr %s1473, 8
          %s1475 = scalar_lea.vmem [#allocation23], %s1474
          %1476 = dma.done %s1472, 128
        $region136: #{gnn_block_check_forward.1} parent=127 // pred_fallthru
          _
      $region128: #{gnn_block_check_forward.1} parent=5 // pred_fallthru
        _
    $region6: #{gnn_block_check_forward.1} parent=1 // loop_footer
      %s42 = sadd.s32 1, %s38
    $region7: #{gnn_block_check_forward.1} parent=1 // loop_footer_branch
      %37 = sbr.rel target = $region3
    $region8: #{gnn_block_check_forward.1} parent=1 // loop_exit
      _
    %1477 = vsyncpa [#allocation5], 1
    %s1478 = scalar_lea.sflag [#allocation5], 1
    %1479 = vsyncpa %s1478, 1
    %1480 = vsyncpa [#allocation8], 1
    %s1481 = scalar_lea.sflag [#allocation8], 1
    %1482 = vsyncpa %s1481, 1
    %1483 = vsyncpa [#allocation11], 1
    %1484 = vsyncpa [#allocation14], 1
    %1485 = vsyncpa [#allocation17], 1
    %1486 = vsyncpa [#allocation20], 1
    %1487 = vsyncpa [#allocation6], 1
    %s1488 = scalar_lea.sflag [#allocation6], 1
    %1489 = vsyncpa %s1488, 1
    %1490 = vsyncpa [#allocation24], 1
    %s1491 = scalar_lea.sflag [#allocation24], 1
    %1492 = vsyncpa %s1491, 1

</llo_original>
